<compile_context>
chip_gen: v5e
topology: v5e:2x2
jax: 0.10.0
libtpu: 0.0.40
codegen_flags: <defaults>
</compile_context>

<pallas_src>
import functools

import jax
import jax.numpy as jnp
from jax.experimental import pallas as pl
from jax.experimental.pallas import tpu as pltpu


def _round_up(x, m):
    return ((x + m - 1) // m) * m


# ---------------------------------------------------------------------------
# Grid (2*R,), R = Np // tm row tiles:
#   t in [0, R)  : phase 0 -> h1_slab = relu(A_slab @ XW1 + b1)
#                            hw2[slab] = (h1_slab @ W2)        (VMEM scratch)
#   t in [R, 2R) : phase 1 -> out_slab = log_softmax(A_slab @ hw2 + b2)
# Phase 1 reads the hw2 scratch written by phase 0, so the single grid axis
# must stay sequential ("arbitrary").
# ---------------------------------------------------------------------------
def fused_gcn_kernel(a_ref, xw1_ref, b1_ref, w2_ref, b2_ref, o_ref, hw2_ref,
                     *, tm, num_row_tiles, a_resident):
    t = pl.program_id(0)
    R = num_row_tiles

    def a_slab(r):
        if a_resident:
            row = pl.multiple_of(r * tm, tm)
            return a_ref[pl.ds(row, tm), :]      # slice the resident A copy
        return a_ref[...]                        # streamed (tm, Np) slab

    @pl.when(t < R)
    def _phase0():
        r = t
        z = jnp.dot(a_slab(r), xw1_ref[...],
                    preferred_element_type=jnp.float32)
        h1 = jnp.maximum(z + b1_ref[...], 0.0).astype(jnp.bfloat16)
        # layer-2 feature transform folded into phase 0 (tiny MXU filler)
        hw2 = jnp.dot(h1, w2_ref[...], preferred_element_type=jnp.float32)
        row = pl.multiple_of(r * tm, tm)
        hw2_ref[pl.ds(row, tm), :] = hw2.astype(jnp.bfloat16)

    @pl.when(t >= R)
    def _phase1():
        r = t - R
        z = jnp.dot(a_slab(r), hw2_ref[...],
                    preferred_element_type=jnp.float32)
        # padded class lanes of b2 are -1e30 -> they vanish from the softmax
        z = z + b2_ref[...]
        m = jnp.max(z, axis=1, keepdims=True)
        s = z - m
        lse = jnp.log(jnp.sum(jnp.exp(s), axis=1, keepdims=True))
        o_ref[...] = (s - lse).astype(o_ref.dtype)


def fused_gcn_forward(x, a_hat, w1, b1, w2, b2, *, row_tile=256):
    n, _ = x.shape
    hdim = w1.shape[1]
    c = w2.shape[1]
    bf = jnp.bfloat16

    tm = row_tile
    n_p = _round_up(n, tm)          # padded node count (rows & cols of A)
    h_p = _round_up(hdim, 128)      # lane-dense hidden dim
    c_p = _round_up(c, 128)         # lane-dense class dim
    R = n_p // tm

    # Layer-1 feature transform hoisted out of the kernel (O(N*F*H), tiny next
    # to the O(N^2) aggregations; frees the (Np,Fp) X buffer from VMEM).
    xw1 = jnp.dot(x.astype(bf), w1.astype(bf),
                  preferred_element_type=jnp.float32).astype(bf)

    def _pad2(arr, shape, dtype, fill=0.0):
        out = jnp.full(shape, fill, dtype)
        return out.at[:arr.shape[0], :arr.shape[1]].set(arr.astype(dtype))

    a_p = _pad2(a_hat, (n_p, n_p), bf)
    xw1_p = _pad2(xw1, (n_p, h_p), bf)
    w2_p = _pad2(w2, (h_p, c_p), bf)
    b1_p = _pad2(b1, (1, h_p), jnp.float32)
    b2_p = _pad2(b2, (1, c_p), jnp.float32, fill=-1e30)   # mask pad classes

    # Single HBM pass over A when it fits comfortably in VMEM; otherwise stream
    # a (tm, Np) row slab per step (A then read once per phase, i.e. twice).
    a_bytes = n_p * n_p * 2
    a_resident = a_bytes <= (16 << 20)
    if a_resident:
        a_spec = pl.BlockSpec((n_p, n_p), lambda t: (0, 0))
    else:
        a_spec = pl.BlockSpec((tm, n_p), lambda t: (t % R, 0))

    # VMEM budget (pipeline double-buffers each input block) -> scoped limit.
    a_buf = 2 * (a_bytes if a_resident else tm * n_p * 2)
    resident_bufs = 2 * (n_p * h_p * 2 + h_p * c_p * 2 + (h_p + c_p) * 4)
    out_buf = 2 * tm * c_p * 4
    scratch_bytes = n_p * c_p * 2
    vmem_limit = min(max(int(1.5 * (a_buf + resident_bufs + out_buf +
                                    scratch_bytes)), 32 << 20), 100 << 20)

    a_passes = 1 if a_resident else 2
    cost = pl.CostEstimate(
        flops=2 * n_p * n_p * (h_p + c_p) + 2 * n_p * h_p * c_p,
        transcendentals=n_p * (c_p + 1),
        bytes_accessed=(a_passes * a_bytes + n_p * h_p * 2 + h_p * c_p * 2
                        + (h_p + c_p) * 4 + n_p * c_p * 4))

    kernel = functools.partial(fused_gcn_kernel, tm=tm, num_row_tiles=R,
                               a_resident=a_resident)

    out_p = pl.pallas_call(
        kernel,
        out_shape=jax.ShapeDtypeStruct((n_p, c_p), jnp.float32),
        grid=(2 * R,),
        in_specs=[
            a_spec,                                        # A_hat
            pl.BlockSpec((n_p, h_p), lambda t: (0, 0)),    # X@W1 (resident)
            pl.BlockSpec((1, h_p), lambda t: (0, 0)),      # b1
            pl.BlockSpec((h_p, c_p), lambda t: (0, 0)),    # W2
            pl.BlockSpec((1, c_p), lambda t: (0, 0)),      # b2 (-1e30 pads)
        ],
        # output block pinned at row-tile 0 during phase 0 (never written back
        # until phase 1 fills it), then advances one row tile per step
        out_specs=pl.BlockSpec((tm, c_p),
                               lambda t: (jnp.maximum(t - R, 0), 0)),
        scratch_shapes=[pltpu.VMEM((n_p, c_p), jnp.bfloat16)],   # h1 @ W2
        compiler_params=pltpu.CompilerParams(
            dimension_semantics=("arbitrary",),   # phase0 -> phase1 dependency
            vmem_limit_bytes=vmem_limit),
        cost_estimate=cost,
    )(a_p, xw1_p, b1_p, w2_p, b2_p)

    return out_p[:n, :c]


# ---------------------------------------------------------------------------
# Plain-JAX glue: dense normalized adjacency from (edge_index, edge_weight)
#   A_hat = D^{-1/2} (A + I) D^{-1/2}   (GCN normalization with self-loops)
# ---------------------------------------------------------------------------
def build_norm_adj(edge_index, edge_weight, num_nodes):
    row, col = edge_index[0], edge_index[1]
    a = jnp.zeros((num_nodes, num_nodes), jnp.float32)
    a = a.at[row, col].add(edge_weight)
    a = a + jnp.eye(num_nodes, dtype=jnp.float32)   # self-loops, weight 1.0
    deg = jnp.sum(a, axis=1)
    d_inv_sqrt = jnp.where(deg > 0, deg ** -0.5, 0.0)
    return d_inv_sqrt[:, None] * a * d_inv_sqrt[None, :]


# Pure-JAX reference mirroring the kernel's bf16 casts (for a sanity check).
def ref_forward(x, a_hat, w1, b1, w2, b2):
    bf = jnp.bfloat16
    a = a_hat.astype(bf)
    xw1 = jnp.dot(x.astype(bf), w1.astype(bf),
                  preferred_element_type=jnp.float32).astype(bf)
    h1 = jnp.maximum(
        jnp.dot(a, xw1, preferred_element_type=jnp.float32) + b1, 0.0
    ).astype(bf)
    hw2 = jnp.dot(h1, w2.astype(bf),
                  preferred_element_type=jnp.float32).astype(bf)
    z = jnp.dot(a, hw2, preferred_element_type=jnp.float32) + b2
    return jax.nn.log_softmax(z, axis=1)


# ---------------------------------------------------------------------------
# Net.forward equivalent:
#   x = relu(GCNConv1(x)); x = GCNConv2(x); return log_softmax(x, dim=1)
# ---------------------------------------------------------------------------
def net_forward(x, a_hat, w1, b1, w2, b2):
    return fused_gcn_forward(x, a_hat, w1, b1, w2, b2)


if __name__ == "__main__":
    key = jax.random.PRNGKey(0)

    # small synthetic "dataset"
    num_nodes = 64
    num_features = 32
    hidden = 16
    num_classes = 8
    num_edges = 256

    k_x, k_src, k_dst, k_ew, k_w1, k_w2 = jax.random.split(key, 6)

    x = jax.random.normal(k_x, (num_nodes, num_features), jnp.float32)
    src = jax.random.randint(k_src, (num_edges,), 0, num_nodes)
    dst = jax.random.randint(k_dst, (num_edges,), 0, num_nodes)
    edge_index = jnp.stack([src, dst], axis=0)
    edge_weight = jax.random.uniform(k_ew, (num_edges,), jnp.float32, 0.1, 1.0)

    # deterministic parameter init mirroring _init_weights:
    # weights ~ N(0, 1), biases zero
    w1 = jax.random.normal(k_w1, (num_features, hidden), jnp.float32)
    b1 = jnp.zeros((1, hidden), jnp.float32)
    w2 = jax.random.normal(k_w2, (hidden, num_classes), jnp.float32)
    b2 = jnp.zeros((1, num_classes), jnp.float32)

    a_hat = build_norm_adj(edge_index, edge_weight, num_nodes)

    out = net_forward(x, a_hat, w1, b1, w2, b2)
    out = jax.block_until_ready(out)

    assert out.shape == (num_nodes, num_classes)
    # rows of log_softmax output must exp-sum to 1
    row_sums = jnp.exp(out).sum(axis=1)
    assert bool(jnp.all(jnp.abs(row_sums - 1.0) < 1e-4))
    # match the bf16-mirrored pure-JAX reference
    ref = ref_forward(x, a_hat, w1, b1, w2, b2)
    assert bool(jnp.allclose(out, ref, atol=2e-2, rtol=0.0))

    print("KERNEL_OK")
</pallas_src>

<mosaic_0001>
module attributes {stable_mosaic.version = 11 : i64} {
  func.func @fused_gcn_kernel(%arg0: i32, %arg1: memref<256x256xbf16, #tpu.memory_space<vmem>>, %arg2: memref<256x128xbf16, #tpu.memory_space<vmem>>, %arg3: memref<1x128xf32, #tpu.memory_space<vmem>>, %arg4: memref<128x128xbf16, #tpu.memory_space<vmem>>, %arg5: memref<1x128xf32, #tpu.memory_space<vmem>>, %arg6: memref<256x128xf32, #tpu.memory_space<vmem>>, %arg7: memref<256x128xbf16, #tpu.memory_space<vmem>>) attributes {dimension_semantics = [#tpu.dimension_semantics<arbitrary>], iteration_bounds = array<i64: 2>, scalar_prefetch = 0 : i64, scratch_operands = 1 : i64, tpu.core_type = #tpu.core_type<tc>, window_params = [{pipeline_mode = #tpu.pipeline_mode<synchronous>, transform_indices = @transform_0, window_bounds = array<i64: 256, 256>}, {pipeline_mode = #tpu.pipeline_mode<synchronous>, transform_indices = @transform_1, window_bounds = array<i64: 256, 128>}, {pipeline_mode = #tpu.pipeline_mode<synchronous>, transform_indices = @transform_2, window_bounds = array<i64: 1, 128>}, {pipeline_mode = #tpu.pipeline_mode<synchronous>, transform_indices = @transform_3, window_bounds = array<i64: 128, 128>}, {pipeline_mode = #tpu.pipeline_mode<synchronous>, transform_indices = @transform_4, window_bounds = array<i64: 1, 128>}, {transform_indices = @transform_5, window_bounds = array<i64: 256, 128>}]} {
    %c1_i32 = arith.constant 1 : i32
    %0 = arith.cmpi slt, %arg0, %c1_i32 : i32
    %1 = arith.extui %0 : i1 to i32
    %c0_i32 = arith.constant 0 : i32
    %2 = arith.cmpi ne, %1, %c0_i32 : i32
    scf.if %2 {
      %c256_i32 = arith.constant 256 : i32
      %6 = arith.muli %arg0, %c256_i32 : i32
      %7 = tpu.assume_multiple %6, 256 : i32
      %8 = arith.index_cast %7 : i32 to index
      %c0 = arith.constant 0 : index
      %9 = vector.load %arg1[%8, %c0] : memref<256x256xbf16, #tpu.memory_space<vmem>>, vector<256x256xbf16>
      %c0_2 = arith.constant 0 : index
      %c0_3 = arith.constant 0 : index
      %10 = vector.load %arg2[%c0_2, %c0_3] : memref<256x128xbf16, #tpu.memory_space<vmem>>, vector<256x128xbf16>
      %cst = arith.constant dense<0.000000e+00> : vector<256x128xf32>
      %11 = tpu.matmul %9, %10, %cst {dimension_numbers = #tpu.dot_dimension_numbers<[1], [0], [0], [1], [0, 0, 1, 1], [], []>} : vector<256x256xbf16>, vector<256x128xbf16>, vector<256x128xf32> -> vector<256x128xf32>
      %c0_4 = arith.constant 0 : index
      %c0_5 = arith.constant 0 : index
      %12 = vector.load %arg3[%c0_4, %c0_5] : memref<1x128xf32, #tpu.memory_space<vmem>>, vector<1x128xf32>
      %13 = vector.broadcast %12 : vector<1x128xf32> to vector<256x128xf32>
      %14 = arith.addf %11, %13 : vector<256x128xf32>
      %cst_6 = arith.constant 0.000000e+00 : f32
      %15 = vector.broadcast %cst_6 : f32 to vector<256x128xf32>
      %16 = arith.maximumf %14, %15 : vector<256x128xf32>
      %17 = arith.truncf %16 : vector<256x128xf32> to vector<256x128xbf16>
      %c0_7 = arith.constant 0 : index
      %c0_8 = arith.constant 0 : index
      %18 = vector.load %arg4[%c0_7, %c0_8] : memref<128x128xbf16, #tpu.memory_space<vmem>>, vector<128x128xbf16>
      %cst_9 = arith.constant dense<0.000000e+00> : vector<256x128xf32>
      %19 = tpu.matmul %17, %18, %cst_9 {dimension_numbers = #tpu.dot_dimension_numbers<[1], [0], [0], [1], [0, 0, 1, 1], [], []>} : vector<256x128xbf16>, vector<128x128xbf16>, vector<256x128xf32> -> vector<256x128xf32>
      %c256_i32_10 = arith.constant 256 : i32
      %20 = arith.muli %arg0, %c256_i32_10 : i32
      %21 = tpu.assume_multiple %20, 256 : i32
      %22 = arith.truncf %19 : vector<256x128xf32> to vector<256x128xbf16>
      %23 = arith.index_cast %21 : i32 to index
      %c0_11 = arith.constant 0 : index
      %24 = vector.load %arg7[%23, %c0_11] : memref<256x128xbf16, #tpu.memory_space<vmem>>, vector<256x128xbf16>
      tpu.vector_store %arg7[%23, %c0_11], %22 {strides = array<i32>} : memref<256x128xbf16, #tpu.memory_space<vmem>>, vector<256x128xbf16>,
    } else {
    }
    %c1_i32_0 = arith.constant 1 : i32
    %3 = arith.cmpi sge, %arg0, %c1_i32_0 : i32
    %4 = arith.extui %3 : i1 to i32
    %c0_i32_1 = arith.constant 0 : i32
    %5 = arith.cmpi ne, %4, %c0_i32_1 : i32
    scf.if %5 {
      %c1_i32_2 = arith.constant 1 : i32
      %6 = arith.subi %arg0, %c1_i32_2 : i32
      %c256_i32 = arith.constant 256 : i32
      %7 = arith.muli %6, %c256_i32 : i32
      %8 = tpu.assume_multiple %7, 256 : i32
      %9 = arith.index_cast %8 : i32 to index
      %c0 = arith.constant 0 : index
      %10 = vector.load %arg1[%9, %c0] : memref<256x256xbf16, #tpu.memory_space<vmem>>, vector<256x256xbf16>
      %c0_3 = arith.constant 0 : index
      %c0_4 = arith.constant 0 : index
      %11 = vector.load %arg7[%c0_3, %c0_4] : memref<256x128xbf16, #tpu.memory_space<vmem>>, vector<256x128xbf16>
      %cst = arith.constant dense<0.000000e+00> : vector<256x128xf32>
      %12 = tpu.matmul %10, %11, %cst {dimension_numbers = #tpu.dot_dimension_numbers<[1], [0], [0], [1], [0, 0, 1, 1], [], []>} : vector<256x256xbf16>, vector<256x128xbf16>, vector<256x128xf32> -> vector<256x128xf32>
      %c0_5 = arith.constant 0 : index
      %c0_6 = arith.constant 0 : index
      %13 = vector.load %arg5[%c0_5, %c0_6] : memref<1x128xf32, #tpu.memory_space<vmem>>, vector<1x128xf32>
      %14 = vector.broadcast %13 : vector<1x128xf32> to vector<256x128xf32>
      %15 = arith.addf %12, %14 : vector<256x128xf32>
      %cst_7 = arith.constant dense<0xFF800000> : vector<256xf32>
      %16 = vector.multi_reduction <maximumf>, %15, %cst_7 [1] : vector<256x128xf32> to vector<256xf32>
      %17 = vector.shape_cast %16 : vector<256xf32> to vector<256x1xf32>
      %18 = vector.broadcast %17 : vector<256x1xf32> to vector<256x128xf32>
      %19 = arith.subf %15, %18 : vector<256x128xf32>
      %20 = math.exp %19 : vector<256x128xf32>
      %cst_8 = arith.constant dense<0.000000e+00> : vector<256xf32>
      %21 = vector.multi_reduction <add>, %20, %cst_8 [1] : vector<256x128xf32> to vector<256xf32>
      %22 = vector.shape_cast %21 : vector<256xf32> to vector<256x1xf32>
      %23 = math.log %22 : vector<256x1xf32>
      %24 = vector.broadcast %23 : vector<256x1xf32> to vector<256x128xf32>
      %25 = arith.subf %19, %24 : vector<256x128xf32>
      %c0_9 = arith.constant 0 : index
      %c0_10 = arith.constant 0 : index
      %26 = vector.load %arg6[%c0_9, %c0_10] : memref<256x128xf32, #tpu.memory_space<vmem>>, vector<256x128xf32>
      tpu.vector_store %arg6[%c0_9, %c0_10], %25 {strides = array<i32>} : memref<256x128xf32, #tpu.memory_space<vmem>>, vector<256x128xf32>,
    } else {
    }
    return
  }
  func.func @transform_0(%arg0: i32) -> (i32, i32) {
    %c0_i32 = arith.constant 0 : i32
    %c0_i32_0 = arith.constant 0 : i32
    %c0_i32_1 = arith.constant 0 : i32
    return %c0_i32, %c0_i32_0 : i32, i32
  }
  func.func @transform_1(%arg0: i32) -> (i32, i32) {
    %c0_i32 = arith.constant 0 : i32
    %c0_i32_0 = arith.constant 0 : i32
    %c0_i32_1 = arith.constant 0 : i32
    return %c0_i32, %c0_i32_0 : i32, i32
  }
  func.func @transform_2(%arg0: i32) -> (i32, i32) {
    %c0_i32 = arith.constant 0 : i32
    %c0_i32_0 = arith.constant 0 : i32
    %c0_i32_1 = arith.constant 0 : i32
    return %c0_i32, %c0_i32_0 : i32, i32
  }
  func.func @transform_3(%arg0: i32) -> (i32, i32) {
    %c0_i32 = arith.constant 0 : i32
    %c0_i32_0 = arith.constant 0 : i32
    %c0_i32_1 = arith.constant 0 : i32
    return %c0_i32, %c0_i32_0 : i32, i32
  }
  func.func @transform_4(%arg0: i32) -> (i32, i32) {
    %c0_i32 = arith.constant 0 : i32
    %c0_i32_0 = arith.constant 0 : i32
    %c0_i32_1 = arith.constant 0 : i32
    return %c0_i32, %c0_i32_0 : i32, i32
  }
  func.func @transform_5(%arg0: i32) -> (i32, i32) {
    %c1_i32 = arith.constant 1 : i32
    %0 = arith.subi %arg0, %c1_i32 : i32
    %c0_i32 = arith.constant 0 : i32
    %1 = arith.maxsi %0, %c0_i32 : i32
    %c0_i32_0 = arith.constant 0 : i32
    %c0_i32_1 = arith.constant 0 : i32
    return %1, %c0_i32_0 : i32, i32
  }
}

</mosaic_0001>

<llo_original>
// kernel: tpu_custom_call.1
$region0: #{tpu_custom_call.1}
  #allocation0 [shape = 'u32[]', space=smem, size = 0x4, offset = 0x4, fixed_abs, tag = 'smem constant byte address 0x4 - core index']
  #allocation1 [shape = 'u32[72,128]{1,0:T(1,128)}', space=vmem, size = 0x9000, scoped, tag = 'internal scratch']
  #allocation2 [shape = 'bf16[256,128]{1,0:T(8,128)(2,1)}', space=vmem, size = 0x10000, scoped, tag = 'scratch operand']
  %s0 = inlined_call_operand.hbm [shape: bf16[256,256], index: 0, kind: input, shape index: {}]
  %s1 = inlined_call_operand.hbm [shape: bf16[256,128], index: 1, kind: input, shape index: {}]
  %s2 = inlined_call_operand.vmem [shape: f32[1,128], index: 2, kind: input, shape index: {}]
  %s3 = inlined_call_operand.hbm [shape: bf16[128,128], index: 3, kind: input, shape index: {}]
  %s4 = inlined_call_operand.vmem [shape: f32[1,128], index: 4, kind: input, shape index: {}]
  %s5 = inlined_call_operand.hbm [shape: f32[256,128], index: 5, kind: output, shape index: {}]
  %s6 = sld [smem:[#allocation0]]
  $region73: #{tpu_custom_call.1} parent=0
    _
  %s8 = ssub.s32 1, %s6
  %s9 = scalar_select 0, %s8, %s6
  $region1: #{tpu_custom_call.1} parent=0
    #allocation3 [shape = 'u8[131072]{0}', space=vmem, size = 0x20000, scoped, tag = 'input window, operand 0, single buffered']
    #allocation4 [shape = 's32[2]{0}', space=sflag, size = 0x8, scoped, tag = 'scoped memory for tpu_custom_call.1']
    #allocation5 [shape = 's32[2]{0}', space=sflag, size = 0x8, scoped, tag = 'scoped memory for tpu_custom_call.1']
    #allocation6 [shape = 'u8[65536]{0}', space=vmem, size = 0x10000, scoped, tag = 'input window, operand 1, single buffered']
    #allocation7 [shape = 's32[1]{0}', space=sflag, size = 0x4, scoped, tag = 'scoped memory for tpu_custom_call.1']
    #allocation8 [shape = 'u8[32768]{0}', space=vmem, size = 0x8000, scoped, tag = 'input window, operand 3, single buffered']
    #allocation9 [shape = 'u8[262144]{0}', space=vmem, size = 0x40000, scoped, tag = 'output window, operand 0']
    %10 = vsyncpa [#allocation4], 0
    %11 = vsyncpa [#allocation7], 0
    %12 = vsyncpa [#allocation5], 0
    %s13 = scalar_lea.sflag [#allocation5], 1
    %14 = vsyncpa %s13, 0
    loop: start=0, step=1, limit=4
    $region2: #{tpu_custom_call.1} parent=1 // loop_pre_header
      _
    $region3: #{tpu_custom_call.1} parent=1 // loop_header
      %s16 = sphi 0, %s20
      %p17 = scmp.ge.s32.totalorder %s16, 4
      %s24 = sphi 0, %s24
      %s26 = sphi 0, %s24
      %s27 = sphi 0, %s26
      %s41 = sphi 0, %s27
      %s45 = sphi 0, %s45
      %s47 = sphi 0, %s45
      %s48 = sphi 0, %s47
      %s62 = sphi 0, %s48
      %s66 = sphi 0, %s66
      %s68 = sphi 0, %s66
      %s69 = sphi 0, %s68
      %s83 = sphi 0, %s69
      %s87 = sphi 0, %s87
      %s89 = sphi 0, %s87
      %s90 = sphi 0, %s89
      %s104 = sphi 0, %s90
      %s108 = sphi 0, %s108
      %s110 = sphi 0, %s108
      %s111 = sphi 0, %s110
      %s125 = sphi 0, %s111
      %s137 = sphi 0, %s139
      %s140 = sphi 0, %s137
      %s141 = sphi 0, %s140
      %s157 = sphi 0, %s141
    $region4: #{tpu_custom_call.1} parent=1 // loop_header_branch
      %19 = sbr.rel (%p17) target = $region8
    $region5: #{tpu_custom_call.1} parent=1 // loop_body
      %s21 = ssub.s32 %s16, 1
      %s22 = ssub.s32 %s16, 2
      %s23 = sadd.s32 %s16, 1
      %s25 = sadd.s32 %s24, 1
      %p28 = scmp.eq.s32.totalorder %s16, 1
      %p29 = scmp.ne.s32.totalorder %s24, %s26
      %p30 = scmp.eq.s32.totalorder %s16, 0
      %p31 = por %p29, %p30
      %p32 = scmp.ne.s32.totalorder %s24, %s26
      %p33 = scmp.eq.s32.totalorder %s21, 1
      %p34 = por %p32, %p33
      %p35 = scmp.ne.s32.totalorder %s26, %s27
      %p36 = scmp.eq.s32.totalorder %s21, 0
      %p37 = por %p35, %p36
      %p38 = scmp.ne.s32.totalorder %s26, %s27
      %p39 = scmp.eq.s32.totalorder %s22, 1
      %p40 = por %p38, %p39
      %p42 = scmp.ne.s32.totalorder %s27, %s41
      %p43 = scmp.eq.s32.totalorder %s22, 0
      %p44 = por %p42, %p43
      %s46 = sadd.s32 %s45, 1
      %p49 = scmp.eq.s32.totalorder %s16, 1
      %p50 = scmp.ne.s32.totalorder %s45, %s47
      %p51 = scmp.eq.s32.totalorder %s16, 0
      %p52 = por %p50, %p51
      %p53 = scmp.ne.s32.totalorder %s45, %s47
      %p54 = scmp.eq.s32.totalorder %s21, 1
      %p55 = por %p53, %p54
      %p56 = scmp.ne.s32.totalorder %s47, %s48
      %p57 = scmp.eq.s32.totalorder %s21, 0
      %p58 = por %p56, %p57
      %p59 = scmp.ne.s32.totalorder %s47, %s48
      %p60 = scmp.eq.s32.totalorder %s22, 1
      %p61 = por %p59, %p60
      %p63 = scmp.ne.s32.totalorder %s48, %s62
      %p64 = scmp.eq.s32.totalorder %s22, 0
      %p65 = por %p63, %p64
      %s67 = sadd.s32 %s66, 1
      %p70 = scmp.eq.s32.totalorder %s16, 1
      %p71 = scmp.ne.s32.totalorder %s66, %s68
      %p72 = scmp.eq.s32.totalorder %s16, 0
      %p73 = por %p71, %p72
      %p74 = scmp.ne.s32.totalorder %s66, %s68
      %p75 = scmp.eq.s32.totalorder %s21, 1
      %p76 = por %p74, %p75
      %p77 = scmp.ne.s32.totalorder %s68, %s69
      %p78 = scmp.eq.s32.totalorder %s21, 0
      %p79 = por %p77, %p78
      %p80 = scmp.ne.s32.totalorder %s68, %s69
      %p81 = scmp.eq.s32.totalorder %s22, 1
      %p82 = por %p80, %p81
      %p84 = scmp.ne.s32.totalorder %s69, %s83
      %p85 = scmp.eq.s32.totalorder %s22, 0
      %p86 = por %p84, %p85
      %s88 = sadd.s32 %s87, 1
      %p91 = scmp.eq.s32.totalorder %s16, 1
      %p92 = scmp.ne.s32.totalorder %s87, %s89
      %p93 = scmp.eq.s32.totalorder %s16, 0
      %p94 = por %p92, %p93
      %p95 = scmp.ne.s32.totalorder %s87, %s89
      %p96 = scmp.eq.s32.totalorder %s21, 1
      %p97 = por %p95, %p96
      %p98 = scmp.ne.s32.totalorder %s89, %s90
      %p99 = scmp.eq.s32.totalorder %s21, 0
      %p100 = por %p98, %p99
      %p101 = scmp.ne.s32.totalorder %s89, %s90
      %p102 = scmp.eq.s32.totalorder %s22, 1
      %p103 = por %p101, %p102
      %p105 = scmp.ne.s32.totalorder %s90, %s104
      %p106 = scmp.eq.s32.totalorder %s22, 0
      %p107 = por %p105, %p106
      %s109 = sadd.s32 %s108, 1
      %p112 = scmp.eq.s32.totalorder %s16, 1
      %p113 = scmp.ne.s32.totalorder %s108, %s110
      %p114 = scmp.eq.s32.totalorder %s16, 0
      %p115 = por %p113, %p114
      %p116 = scmp.ne.s32.totalorder %s108, %s110
      %p117 = scmp.eq.s32.totalorder %s21, 1
      %p118 = por %p116, %p117
      %p119 = scmp.ne.s32.totalorder %s110, %s111
      %p120 = scmp.eq.s32.totalorder %s21, 0
      %p121 = por %p119, %p120
      %p122 = scmp.ne.s32.totalorder %s110, %s111
      %p123 = scmp.eq.s32.totalorder %s22, 1
      %p124 = por %p122, %p123
      %p126 = scmp.ne.s32.totalorder %s111, %s125
      %p127 = scmp.eq.s32.totalorder %s22, 0
      %p128 = por %p126, %p127
      %s129 = ssub.s32 %s16, 1
      %p130 = scmp.gt.s32.totalorder %s129, 0
      %s131 = scalar_select %p130, %s129, 0
      %s132 = ssub.s32 %s23, 1
      %p133 = scmp.gt.s32.totalorder %s132, 0
      %s134 = scalar_select %p133, %s132, 0
      %s135 = ssub.s32 %s131, %s134
      %p136 = scmp.eq.s32.totalorder %s135, 0
      %s138 = sadd.s32 %s137, 1
      %s139 = scalar_select %p136, %s137, %s138
      %p142 = pneg %p136
      %p143 = scmp.eq.s32.totalorder %s16, 1
      %p144 = por %p142, %p143
      %p145 = scmp.ne.s32.totalorder %s137, %s140
      %p146 = scmp.eq.s32.totalorder %s16, 0
      %p147 = por %p145, %p146
      %p148 = scmp.ne.s32.totalorder %s137, %s140
      %p149 = scmp.eq.s32.totalorder %s21, 1
      %p150 = por %p148, %p149
      %p151 = scmp.ne.s32.totalorder %s140, %s141
      %p152 = scmp.eq.s32.totalorder %s21, 0
      %p153 = por %p151, %p152
      %p154 = scmp.ne.s32.totalorder %s140, %s141
      %p155 = scmp.eq.s32.totalorder %s22, 1
      %p156 = por %p154, %p155
      %p158 = scmp.ne.s32.totalorder %s141, %s157
      %p159 = scmp.eq.s32.totalorder %s22, 0
      %p160 = por %p158, %p159
      %p161 = scmp.le.s32.totalorder 1, %s16
      %p162 = scmp.lt.s32.totalorder %s16, 3
      %p163 = pnand %p161, %p162
      %p164 = pneg %p163
      // Predicated region
      $region9: #{tpu_custom_call.1} parent=5 // pred_check
        _
      $region10: #{tpu_custom_call.1} parent=5 // pred_check_branch
        %166 = sbr.rel (%p163) target = $region12
      $region11: #{tpu_custom_call.1} parent=5 // pred_region
        %s167 = ssub.s32 %s16, 1
        // Predicated region
        $region13: #{tpu_custom_call.1} parent=11 // pred_check
          %p168 = pneg %p37
        $region14: #{tpu_custom_call.1} parent=11 // pred_check_branch
          %170 = sbr.rel (%p168) target = $region16
        $region15: #{tpu_custom_call.1} parent=11 // pred_region
          %172 = vsyncadd [#allocation4], 0
          %s173 = sshll.u32 %s0, 4
          %s174 = int_to_ptr.hbm [resolvable:$true] %s173
          %s175 = sshll.u32 [#allocation3], 4
          %s176 = int_to_ptr.vmem [resolvable:$true] %s175
          %181 = dma.hbm_to_vmem [thread:$0]  %s174, 4096, %s176, [#allocation4], 128, 128, 8
        $region16: #{tpu_custom_call.1} parent=11 // pred_fallthru
          _
        // Predicated region
        $region17: #{tpu_custom_call.1} parent=11 // pred_check
          %p182 = pneg %p58
        $region18: #{tpu_custom_call.1} parent=11 // pred_check_branch
          %184 = sbr.rel (%p182) target = $region20
        $region19: #{tpu_custom_call.1} parent=11 // pred_region
          %186 = vsyncadd [#allocation7], 0
          %s187 = sshll.u32 %s1, 4
          %s188 = int_to_ptr.hbm [resolvable:$true] %s187
          %s189 = sshll.u32 [#allocation6], 4
          %s190 = int_to_ptr.vmem [resolvable:$true] %s189
          %195 = dma.hbm_to_vmem [thread:$0]  %s188, 2048, %s190, [#allocation7], 64, 64, 4
        $region20: #{tpu_custom_call.1} parent=11 // pred_fallthru
          _
        // Predicated region
        $region21: #{tpu_custom_call.1} parent=11 // pred_check
          %p196 = pneg %p79
        $region22: #{tpu_custom_call.1} parent=11 // pred_check_branch
          %198 = sbr.rel (%p196) target = $region24
        $region23: #{tpu_custom_call.1} parent=11 // pred_region
          _
        $region24: #{tpu_custom_call.1} parent=11 // pred_fallthru
          _
        // Predicated region
        $region25: #{tpu_custom_call.1} parent=11 // pred_check
          %p199 = pneg %p100
        $region26: #{tpu_custom_call.1} parent=11 // pred_check_branch
          %201 = sbr.rel (%p199) target = $region28
        $region27: #{tpu_custom_call.1} parent=11 // pred_region
          %203 = vsyncadd [#allocation7], 0
          %s204 = sshll.u32 %s3, 4
          %s205 = int_to_ptr.hbm [resolvable:$true] %s204
          %s206 = sshll.u32 [#allocation8], 4
          %s207 = int_to_ptr.vmem [resolvable:$true] %s206
          %212 = dma.hbm_to_vmem [thread:$0]  %s205, 1024, %s207, [#allocation7], 64, 64, 4
        $region28: #{tpu_custom_call.1} parent=11 // pred_fallthru
          _
        // Predicated region
        $region29: #{tpu_custom_call.1} parent=11 // pred_check
          %p213 = pneg %p121
        $region30: #{tpu_custom_call.1} parent=11 // pred_check_branch
          %215 = sbr.rel (%p213) target = $region32
        $region31: #{tpu_custom_call.1} parent=11 // pred_region
          _
        $region32: #{tpu_custom_call.1} parent=11 // pred_fallthru
          _
      $region12: #{tpu_custom_call.1} parent=5 // pred_fallthru
        _
      %p216 = scmp.lt.s32.totalorder %s16, 2
      // Predicated region
      $region33: #{tpu_custom_call.1} parent=5 // pred_check
        %p217 = pneg %p216
      $region34: #{tpu_custom_call.1} parent=5 // pred_check_branch
        %219 = sbr.rel (%p217) target = $region36
      $region35: #{tpu_custom_call.1} parent=5 // pred_region
        _
      $region36: #{tpu_custom_call.1} parent=5 // pred_fallthru
        _
      %p220 = scmp.le.s32.totalorder 1, %s16
      %p221 = scmp.lt.s32.totalorder %s16, 3
      %p222 = pnand %p220, %p221
      %p223 = pneg %p222
      // Predicated region
      $region37: #{tpu_custom_call.1} parent=5 // pred_check
        _
      $region38: #{tpu_custom_call.1} parent=5 // pred_check_branch
        %225 = sbr.rel (%p222) target = $region40
      $region39: #{tpu_custom_call.1} parent=5 // pred_region
        %s226 = ssub.s32 %s16, 1
        // Predicated region
        $region41: #{tpu_custom_call.1} parent=39 // pred_check
          %p227 = pneg %p37
        $region42: #{tpu_custom_call.1} parent=39 // pred_check_branch
          %229 = sbr.rel (%p227) target = $region44
        $region43: #{tpu_custom_call.1} parent=39 // pred_region
          %231 = dma.done [#allocation4], 4096
        $region44: #{tpu_custom_call.1} parent=39 // pred_fallthru
          _
        // Predicated region
        $region45: #{tpu_custom_call.1} parent=39 // pred_check
          %p232 = pneg %p58
        $region46: #{tpu_custom_call.1} parent=39 // pred_check_branch
          %234 = sbr.rel (%p232) target = $region48
        $region47: #{tpu_custom_call.1} parent=39 // pred_region
          %236 = dma.done [#allocation7], 2048
        $region48: #{tpu_custom_call.1} parent=39 // pred_fallthru
          _
        // Predicated region
        $region49: #{tpu_custom_call.1} parent=39 // pred_check
          %p237 = pneg %p100
        $region50: #{tpu_custom_call.1} parent=39 // pred_check_branch
          %239 = sbr.rel (%p237) target = $region52
        $region51: #{tpu_custom_call.1} parent=39 // pred_region
          %241 = dma.done [#allocation7], 1024
        $region52: #{tpu_custom_call.1} parent=39 // pred_fallthru
          _
        %p242 = pneg %p37
        %p243 = pneg %p34
        %p244 = pneg %p58
        %p245 = pneg %p55
        %p246 = pneg %p79
        %p247 = pneg %p76
        %p248 = pneg %p100
        %p249 = pneg %p97
        %p250 = pneg %p121
        %p251 = pneg %p118
        %p252 = pneg %p153
        %p253 = pneg %p150
        %s254 = sand.u32 %s140, 1
        %s255 = scalar_lea.sflag [#allocation5], %s254
        %s256 = sand.u32 %s140, 1
        %s257 = smul.addr %s256, 256
        %s258 = scalar_lea.vmem [#allocation9], %s257
        %s259 = ssub.s32 %s21, 1
        %p260 = scmp.gt.s32.totalorder %s259, 0
        %s261 = scalar_select %p260, %s259, 0
        %s262 = smul.u32 32, %s261
        %p263 = scmp.lt.s32.totalorder %s21, 1
        // Predicated region
        $region53: #{tpu_custom_call.1} parent=39 // pred_check
          %p264 = pneg %p263
        $region54: #{tpu_custom_call.1} parent=39 // pred_check_branch
          %266 = sbr.rel (%p264) target = $region56
        $region55: #{tpu_custom_call.1} parent=39 // pred_region
          %s267 = smul.u32 %s21, 256
          %s268 = sshra.s32 %s267, 3
          %s269 = sand.u32 %s267, 7
          %s270 = smul.u32 %s268, 2
          %s271 = smul.addr %s270, 4
          %s272 = scalar_lea.vmem [#allocation3], %s271
          %v273 = vld [vmem:[%s272] sm:$0xff]
          %v274 = vld [vmem:[%s272 + $0x8] sm:$0xff]
          %v275 = vld [vmem:[%s272 + $0x10] sm:$0xff]
          %v276 = vld [vmem:[%s272 + $0x18] sm:$0xff]
          %v277 = vld [vmem:[%s272 + $0x20] sm:$0xff]
          %v278 = vld [vmem:[%s272 + $0x28] sm:$0xff]
          %v279 = vld [vmem:[%s272 + $0x30] sm:$0xff]
          %v280 = vld [vmem:[%s272 + $0x38] sm:$0xff]
          %v281 = vld [vmem:[%s272 + $0x40] sm:$0xff]
          %v282 = vld [vmem:[%s272 + $0x48] sm:$0xff]
          %v283 = vld [vmem:[%s272 + $0x50] sm:$0xff]
          %v284 = vld [vmem:[%s272 + $0x58] sm:$0xff]
          %v285 = vld [vmem:[%s272 + $0x60] sm:$0xff]
          %v286 = vld [vmem:[%s272 + $0x68] sm:$0xff]
          %v287 = vld [vmem:[%s272 + $0x70] sm:$0xff]
          %v288 = vld [vmem:[%s272 + $0x78] sm:$0xff]
          %v289 = vld [vmem:[%s272 + $0x80] sm:$0xff]
          %v290 = vld [vmem:[%s272 + $0x88] sm:$0xff]
          %v291 = vld [vmem:[%s272 + $0x90] sm:$0xff]
          %v292 = vld [vmem:[%s272 + $0x98] sm:$0xff]
          %v293 = vld [vmem:[%s272 + $0xa0] sm:$0xff]
          %v294 = vld [vmem:[%s272 + $0xa8] sm:$0xff]
          %v295 = vld [vmem:[%s272 + $0xb0] sm:$0xff]
          %v296 = vld [vmem:[%s272 + $0xb8] sm:$0xff]
          %v297 = vld [vmem:[%s272 + $0xc0] sm:$0xff]
          %v298 = vld [vmem:[%s272 + $0xc8] sm:$0xff]
          %v299 = vld [vmem:[%s272 + $0xd0] sm:$0xff]
          %v300 = vld [vmem:[%s272 + $0xd8] sm:$0xff]
          %v301 = vld [vmem:[%s272 + $0xe0] sm:$0xff]
          %v302 = vld [vmem:[%s272 + $0xe8] sm:$0xff]
          %v303 = vld [vmem:[%s272 + $0xf0] sm:$0xff]
          %v304 = vld [vmem:[%s272 + $0xf8] sm:$0xff]
          %v305 = vld [vmem:[#allocation6] sm:$0xf]
          %v306 = vld [vmem:[#allocation6 + $0x4] sm:$0xf]
          %v307 = vld [vmem:[#allocation6 + $0x8] sm:$0xf]
          %v308 = vld [vmem:[#allocation6 + $0xc] sm:$0xf]
          %v309 = vld [vmem:[#allocation6 + $0x10] sm:$0xf]
          %v310 = vld [vmem:[#allocation6 + $0x14] sm:$0xf]
          %v311 = vld [vmem:[#allocation6 + $0x18] sm:$0xf]
          %v312 = vld [vmem:[#allocation6 + $0x1c] sm:$0xf]
          %v313 = vld [vmem:[#allocation6 + $0x20] sm:$0xf]
          %v314 = vld [vmem:[#allocation6 + $0x24] sm:$0xf]
          %v315 = vld [vmem:[#allocation6 + $0x28] sm:$0xf]
          %v316 = vld [vmem:[#allocation6 + $0x2c] sm:$0xf]
          %v317 = vld [vmem:[#allocation6 + $0x30] sm:$0xf]
          %v318 = vld [vmem:[#allocation6 + $0x34] sm:$0xf]
          %v319 = vld [vmem:[#allocation6 + $0x38] sm:$0xf]
          %v320 = vld [vmem:[#allocation6 + $0x3c] sm:$0xf]
          %v321 = vld [vmem:[#allocation6 + $0x40] sm:$0xf]
          %v322 = vld [vmem:[#allocation6 + $0x44] sm:$0xf]
          %v323 = vld [vmem:[#allocation6 + $0x48] sm:$0xf]
          %v324 = vld [vmem:[#allocation6 + $0x4c] sm:$0xf]
          %v325 = vld [vmem:[#allocation6 + $0x50] sm:$0xf]
          %v326 = vld [vmem:[#allocation6 + $0x54] sm:$0xf]
          %v327 = vld [vmem:[#allocation6 + $0x58] sm:$0xf]
          %v328 = vld [vmem:[#allocation6 + $0x5c] sm:$0xf]
          %v329 = vld [vmem:[#allocation6 + $0x60] sm:$0xf]
          %v330 = vld [vmem:[#allocation6 + $0x64] sm:$0xf]
          %v331 = vld [vmem:[#allocation6 + $0x68] sm:$0xf]
          %v332 = vld [vmem:[#allocation6 + $0x6c] sm:$0xf]
          %v333 = vld [vmem:[#allocation6 + $0x70] sm:$0xf]
          %v334 = vld [vmem:[#allocation6 + $0x74] sm:$0xf]
          %v335 = vld [vmem:[#allocation6 + $0x78] sm:$0xf]
          %v336 = vld [vmem:[#allocation6 + $0x7c] sm:$0xf]
          %v337 = vld [vmem:[%s2] sm:$0x1]
          %v339 = vperm.slane %v337, 0
          %v373 = vunpack.c.l.b16 %v273
          %v374 = vunpack.c.h.b16 %v273
          %v375 = vunpack.c.l.b16 %v274
          %v376 = vunpack.c.h.b16 %v274
          %v377 = vunpack.c.l.b16 %v275
          %v378 = vunpack.c.h.b16 %v275
          %v379 = vunpack.c.l.b16 %v276
          %v380 = vunpack.c.h.b16 %v276
          %v381 = vunpack.c.l.b16 %v277
          %v382 = vunpack.c.h.b16 %v277
          %v383 = vunpack.c.l.b16 %v278
          %v384 = vunpack.c.h.b16 %v278
          %v385 = vunpack.c.l.b16 %v279
          %v386 = vunpack.c.h.b16 %v279
          %v387 = vunpack.c.l.b16 %v280
          %v388 = vunpack.c.h.b16 %v280
          %v389 = vunpack.c.l.b16 %v281
          %v390 = vunpack.c.h.b16 %v281
          %v391 = vunpack.c.l.b16 %v282
          %v392 = vunpack.c.h.b16 %v282
          %v393 = vunpack.c.l.b16 %v283
          %v394 = vunpack.c.h.b16 %v283
          %v395 = vunpack.c.l.b16 %v284
          %v396 = vunpack.c.h.b16 %v284
          %v397 = vunpack.c.l.b16 %v285
          %v398 = vunpack.c.h.b16 %v285
          %v399 = vunpack.c.l.b16 %v286
          %v400 = vunpack.c.h.b16 %v286
          %v401 = vunpack.c.l.b16 %v287
          %v402 = vunpack.c.h.b16 %v287
          %v403 = vunpack.c.l.b16 %v288
          %v404 = vunpack.c.h.b16 %v288
          %v405 = vunpack.c.l.b16 %v289
          %v406 = vunpack.c.h.b16 %v289
          %v407 = vunpack.c.l.b16 %v290
          %v408 = vunpack.c.h.b16 %v290
          %v409 = vunpack.c.l.b16 %v291
          %v410 = vunpack.c.h.b16 %v291
          %v411 = vunpack.c.l.b16 %v292
          %v412 = vunpack.c.h.b16 %v292
          %v413 = vunpack.c.l.b16 %v293
          %v414 = vunpack.c.h.b16 %v293
          %v415 = vunpack.c.l.b16 %v294
          %v416 = vunpack.c.h.b16 %v294
          %v417 = vunpack.c.l.b16 %v295
          %v418 = vunpack.c.h.b16 %v295
          %v419 = vunpack.c.l.b16 %v296
          %v420 = vunpack.c.h.b16 %v296
          %v421 = vunpack.c.l.b16 %v297
          %v422 = vunpack.c.h.b16 %v297
          %v423 = vunpack.c.l.b16 %v298
          %v424 = vunpack.c.h.b16 %v298
          %v425 = vunpack.c.l.b16 %v299
          %v426 = vunpack.c.h.b16 %v299
          %v427 = vunpack.c.l.b16 %v300
          %v428 = vunpack.c.h.b16 %v300
          %v429 = vunpack.c.l.b16 %v301
          %v430 = vunpack.c.h.b16 %v301
          %v431 = vunpack.c.l.b16 %v302
          %v432 = vunpack.c.h.b16 %v302
          %v433 = vunpack.c.l.b16 %v303
          %v434 = vunpack.c.h.b16 %v303
          %v435 = vunpack.c.l.b16 %v304
          %v436 = vunpack.c.h.b16 %v304
          %v437 = vpack.c.b16 %v375, %v373
          %v438 = vpack.c.b16 %v376, %v374
          %v439 = vpack.c.b16 %v379, %v377
          %v440 = vpack.c.b16 %v380, %v378
          %v441 = vpack.c.b16 %v383, %v381
          %v442 = vpack.c.b16 %v384, %v382
          %v443 = vpack.c.b16 %v387, %v385
          %v444 = vpack.c.b16 %v388, %v386
          %v445 = vpack.c.b16 %v391, %v389
          %v446 = vpack.c.b16 %v392, %v390
          %v447 = vpack.c.b16 %v395, %v393
          %v448 = vpack.c.b16 %v396, %v394
          %v449 = vpack.c.b16 %v399, %v397
          %v450 = vpack.c.b16 %v400, %v398
          %v451 = vpack.c.b16 %v403, %v401
          %v452 = vpack.c.b16 %v404, %v402
          %v453 = vpack.c.b16 %v407, %v405
          %v454 = vpack.c.b16 %v408, %v406
          %v455 = vpack.c.b16 %v411, %v409
          %v456 = vpack.c.b16 %v412, %v410
          %v457 = vpack.c.b16 %v415, %v413
          %v458 = vpack.c.b16 %v416, %v414
          %v459 = vpack.c.b16 %v419, %v417
          %v460 = vpack.c.b16 %v420, %v418
          %v461 = vpack.c.b16 %v423, %v421
          %v462 = vpack.c.b16 %v424, %v422
          %v463 = vpack.c.b16 %v427, %v425
          %v464 = vpack.c.b16 %v428, %v426
          %v465 = vpack.c.b16 %v431, %v429
          %v466 = vpack.c.b16 %v432, %v430
          %v467 = vpack.c.b16 %v435, %v433
          %v468 = vpack.c.b16 %v436, %v434
          %v533 = vunpack.c.l.b16 %v305
          %v534 = vunpack.c.l.b16 %v306
          %v535 = vunpack.c.l.b16 %v307
          %v536 = vunpack.c.l.b16 %v308
          %v537 = vunpack.c.l.b16 %v309
          %v538 = vunpack.c.l.b16 %v310
          %v539 = vunpack.c.l.b16 %v311
          %v540 = vunpack.c.l.b16 %v312
          %v541 = vunpack.c.l.b16 %v313
          %v542 = vunpack.c.l.b16 %v314
          %v543 = vunpack.c.l.b16 %v315
          %v544 = vunpack.c.l.b16 %v316
          %v545 = vunpack.c.l.b16 %v317
          %v546 = vunpack.c.l.b16 %v318
          %v547 = vunpack.c.l.b16 %v319
          %v548 = vunpack.c.l.b16 %v320
          %v549 = vunpack.c.l.b16 %v321
          %v550 = vunpack.c.l.b16 %v322
          %v551 = vunpack.c.l.b16 %v323
          %v552 = vunpack.c.l.b16 %v324
          %v553 = vunpack.c.l.b16 %v325
          %v554 = vunpack.c.l.b16 %v326
          %v555 = vunpack.c.l.b16 %v327
          %v556 = vunpack.c.l.b16 %v328
          %v557 = vunpack.c.l.b16 %v329
          %v558 = vunpack.c.l.b16 %v330
          %v559 = vunpack.c.l.b16 %v331
          %v560 = vunpack.c.l.b16 %v332
          %v561 = vunpack.c.l.b16 %v333
          %v562 = vunpack.c.l.b16 %v334
          %v563 = vunpack.c.l.b16 %v335
          %v564 = vunpack.c.l.b16 %v336
          %v565 = vpack.c.b16 %v534, %v533
          %v566 = vpack.c.b16 %v536, %v535
          %v567 = vpack.c.b16 %v538, %v537
          %v568 = vpack.c.b16 %v540, %v539
          %v569 = vpack.c.b16 %v542, %v541
          %v570 = vpack.c.b16 %v544, %v543
          %v571 = vpack.c.b16 %v546, %v545
          %v572 = vpack.c.b16 %v548, %v547
          %v573 = vpack.c.b16 %v550, %v549
          %v574 = vpack.c.b16 %v552, %v551
          %v575 = vpack.c.b16 %v554, %v553
          %v576 = vpack.c.b16 %v556, %v555
          %v577 = vpack.c.b16 %v558, %v557
          %v578 = vpack.c.b16 %v560, %v559
          %v579 = vpack.c.b16 %v562, %v561
          %v580 = vpack.c.b16 %v564, %v563
          %597 = vmatpush.bf16.msra.mxu0 %v572
          %598 = vmatpush.bf16.msra.mxu0 %v571
          %599 = vmatpush.bf16.msra.mxu0 %v570
          %600 = vmatpush.bf16.msra.mxu0 %v569
          %601 = vmatpush.bf16.msra.mxu0 %v568
          %602 = vmatpush.bf16.msra.mxu0 %v567
          %603 = vmatpush.bf16.msra.mxu0 %v566
          %604 = vmatpush.bf16.msra.mxu0 %v565
          %605 = vmatmul.bf16.gmra.mxu0 %v437
          %v606 = vpop.f32.mrf.mxu0
          %v607 = vadd.f32 %v339, %v606
          %v608 = vpop.f32.mrf.mxu0
          %v609 = vadd.f32 %v339, %v608
          %610 = vmatmul.bf16.gmra.mxu0 %v439
          %v611 = vpop.f32.mrf.mxu0
          %v612 = vadd.f32 %v339, %v611
          %v613 = vpop.f32.mrf.mxu0
          %v614 = vadd.f32 %v339, %v613
          %615 = vmatmul.bf16.gmra.mxu0 %v441
          %v616 = vpop.f32.mrf.mxu0
          %v617 = vadd.f32 %v339, %v616
          %v618 = vpop.f32.mrf.mxu0
          %v619 = vadd.f32 %v339, %v618
          %620 = vmatmul.bf16.gmra.mxu0 %v443
          %v621 = vpop.f32.mrf.mxu0
          %v622 = vadd.f32 %v339, %v621
          %v623 = vpop.f32.mrf.mxu0
          %v624 = vadd.f32 %v339, %v623
          %625 = vmatmul.bf16.gmra.mxu0 %v445
          %v626 = vpop.f32.mrf.mxu0
          %v627 = vadd.f32 %v339, %v626
          %v628 = vpop.f32.mrf.mxu0
          %v629 = vadd.f32 %v339, %v628
          %630 = vmatmul.bf16.gmra.mxu0 %v447
          %v631 = vpop.f32.mrf.mxu0
          %v632 = vadd.f32 %v339, %v631
          %v633 = vpop.f32.mrf.mxu0
          %v634 = vadd.f32 %v339, %v633
          %635 = vmatmul.bf16.gmra.mxu0 %v449
          %v636 = vpop.f32.mrf.mxu0
          %v637 = vadd.f32 %v339, %v636
          %v638 = vpop.f32.mrf.mxu0
          %v639 = vadd.f32 %v339, %v638
          %640 = vmatmul.bf16.gmra.mxu0 %v451
          %v641 = vpop.f32.mrf.mxu0
          %v642 = vadd.f32 %v339, %v641
          %v643 = vpop.f32.mrf.mxu0
          %v644 = vadd.f32 %v339, %v643
          %645 = vmatmul.bf16.gmra.mxu0 %v453
          %v646 = vpop.f32.mrf.mxu0
          %v647 = vadd.f32 %v339, %v646
          %v648 = vpop.f32.mrf.mxu0
          %v649 = vadd.f32 %v339, %v648
          %650 = vmatmul.bf16.gmra.mxu0 %v455
          %v651 = vpop.f32.mrf.mxu0
          %v652 = vadd.f32 %v339, %v651
          %v653 = vpop.f32.mrf.mxu0
          %v654 = vadd.f32 %v339, %v653
          %655 = vmatmul.bf16.gmra.mxu0 %v457
          %v656 = vpop.f32.mrf.mxu0
          %v657 = vadd.f32 %v339, %v656
          %v658 = vpop.f32.mrf.mxu0
          %v659 = vadd.f32 %v339, %v658
          %660 = vmatmul.bf16.gmra.mxu0 %v459
          %v661 = vpop.f32.mrf.mxu0
          %v662 = vadd.f32 %v339, %v661
          %v663 = vpop.f32.mrf.mxu0
          %v664 = vadd.f32 %v339, %v663
          %665 = vmatmul.bf16.gmra.mxu0 %v461
          %v666 = vpop.f32.mrf.mxu0
          %v667 = vadd.f32 %v339, %v666
          %v668 = vpop.f32.mrf.mxu0
          %v669 = vadd.f32 %v339, %v668
          %670 = vmatmul.bf16.gmra.mxu0 %v463
          %v671 = vpop.f32.mrf.mxu0
          %v672 = vadd.f32 %v339, %v671
          %v673 = vpop.f32.mrf.mxu0
          %v674 = vadd.f32 %v339, %v673
          %675 = vmatmul.bf16.gmra.mxu0 %v465
          %v676 = vpop.f32.mrf.mxu0
          %v677 = vadd.f32 %v339, %v676
          %v678 = vpop.f32.mrf.mxu0
          %v679 = vadd.f32 %v339, %v678
          %680 = vmatmul.bf16.gmra.mxu0 %v467
          %v681 = vpop.f32.mrf.mxu0
          %v682 = vadd.f32 %v339, %v681
          %v683 = vpop.f32.mrf.mxu0
          %v684 = vadd.f32 %v339, %v683
          %685 = vdwg.mxu0
          %686 = vmatpush.bf16.msra.mxu0 %v580
          %687 = vmatpush.bf16.msra.mxu0 %v579
          %688 = vmatpush.bf16.msra.mxu0 %v578
          %689 = vmatpush.bf16.msra.mxu0 %v577
          %690 = vmatpush.bf16.msra.mxu0 %v576
          %691 = vmatpush.bf16.msra.mxu0 %v575
          %692 = vmatpush.bf16.msra.mxu0 %v574
          %693 = vmatpush.bf16.msra.mxu0 %v573
          %694 = vmatmul.bf16.gmra.mxu0 %v438
          %v695 = vpop.f32.mrf.mxu0
          %v696 = vadd.f32 %v607, %v695
          %v697 = vpop.f32.mrf.mxu0
          %v698 = vadd.f32 %v609, %v697
          %699 = vmatmul.bf16.gmra.mxu0 %v440
          %v700 = vpop.f32.mrf.mxu0
          %v701 = vadd.f32 %v612, %v700
          %v702 = vpop.f32.mrf.mxu0
          %v703 = vadd.f32 %v614, %v702
          %704 = vmatmul.bf16.gmra.mxu0 %v442
          %v705 = vpop.f32.mrf.mxu0
          %v706 = vadd.f32 %v617, %v705
          %v707 = vpop.f32.mrf.mxu0
          %v708 = vadd.f32 %v619, %v707
          %709 = vmatmul.bf16.gmra.mxu0 %v444
          %v710 = vpop.f32.mrf.mxu0
          %v711 = vadd.f32 %v622, %v710
          %v712 = vpop.f32.mrf.mxu0
          %v713 = vadd.f32 %v624, %v712
          %714 = vmatmul.bf16.gmra.mxu0 %v446
          %v715 = vpop.f32.mrf.mxu0
          %v716 = vadd.f32 %v627, %v715
          %v717 = vpop.f32.mrf.mxu0
          %v718 = vadd.f32 %v629, %v717
          %719 = vmatmul.bf16.gmra.mxu0 %v448
          %v720 = vpop.f32.mrf.mxu0
          %v721 = vadd.f32 %v632, %v720
          %v722 = vpop.f32.mrf.mxu0
          %v723 = vadd.f32 %v634, %v722
          %724 = vmatmul.bf16.gmra.mxu0 %v450
          %v725 = vpop.f32.mrf.mxu0
          %v726 = vadd.f32 %v637, %v725
          %v727 = vpop.f32.mrf.mxu0
          %v728 = vadd.f32 %v639, %v727
          %729 = vmatmul.bf16.gmra.mxu0 %v452
          %v730 = vpop.f32.mrf.mxu0
          %v731 = vadd.f32 %v642, %v730
          %v732 = vpop.f32.mrf.mxu0
          %v733 = vadd.f32 %v644, %v732
          %734 = vmatmul.bf16.gmra.mxu0 %v454
          %v735 = vpop.f32.mrf.mxu0
          %v736 = vadd.f32 %v647, %v735
          %v737 = vpop.f32.mrf.mxu0
          %v738 = vadd.f32 %v649, %v737
          %739 = vmatmul.bf16.gmra.mxu0 %v456
          %v740 = vpop.f32.mrf.mxu0
          %v741 = vadd.f32 %v652, %v740
          %v742 = vpop.f32.mrf.mxu0
          %v743 = vadd.f32 %v654, %v742
          %744 = vmatmul.bf16.gmra.mxu0 %v458
          %v745 = vpop.f32.mrf.mxu0
          %v746 = vadd.f32 %v657, %v745
          %v747 = vpop.f32.mrf.mxu0
          %v748 = vadd.f32 %v659, %v747
          %749 = vmatmul.bf16.gmra.mxu0 %v460
          %v750 = vpop.f32.mrf.mxu0
          %v751 = vadd.f32 %v662, %v750
          %v752 = vpop.f32.mrf.mxu0
          %v753 = vadd.f32 %v664, %v752
          %754 = vmatmul.bf16.gmra.mxu0 %v462
          %v755 = vpop.f32.mrf.mxu0
          %v756 = vadd.f32 %v667, %v755
          %v757 = vpop.f32.mrf.mxu0
          %v758 = vadd.f32 %v669, %v757
          %759 = vmatmul.bf16.gmra.mxu0 %v464
          %v760 = vpop.f32.mrf.mxu0
          %v761 = vadd.f32 %v672, %v760
          %v762 = vpop.f32.mrf.mxu0
          %v763 = vadd.f32 %v674, %v762
          %764 = vmatmul.bf16.gmra.mxu0 %v466
          %v765 = vpop.f32.mrf.mxu0
          %v766 = vadd.f32 %v677, %v765
          %v767 = vpop.f32.mrf.mxu0
          %v768 = vadd.f32 %v679, %v767
          %769 = vmatmul.bf16.gmra.mxu0 %v468
          %v770 = vpop.f32.mrf.mxu0
          %v771 = vadd.f32 %v682, %v770
          %v772 = vpop.f32.mrf.mxu0
          %v773 = vadd.f32 %v684, %v772
          %774 = vdwg.mxu0
          %v775 = vmax.f32 %v696, 0.0
          %v776 = vmax.f32 %v698, 0.0
          %v777 = vmax.f32 %v701, 0.0
          %v778 = vmax.f32 %v703, 0.0
          %v779 = vmax.f32 %v706, 0.0
          %v780 = vmax.f32 %v708, 0.0
          %v781 = vmax.f32 %v711, 0.0
          %v782 = vmax.f32 %v713, 0.0
          %v783 = vmax.f32 %v716, 0.0
          %v784 = vmax.f32 %v718, 0.0
          %v785 = vmax.f32 %v721, 0.0
          %v786 = vmax.f32 %v723, 0.0
          %v787 = vmax.f32 %v726, 0.0
          %v788 = vmax.f32 %v728, 0.0
          %v789 = vmax.f32 %v731, 0.0
          %v790 = vmax.f32 %v733, 0.0
          %v791 = vmax.f32 %v736, 0.0
          %v792 = vmax.f32 %v738, 0.0
          %v793 = vmax.f32 %v741, 0.0
          %v794 = vmax.f32 %v743, 0.0
          %v795 = vmax.f32 %v746, 0.0
          %v796 = vmax.f32 %v748, 0.0
          %v797 = vmax.f32 %v751, 0.0
          %v798 = vmax.f32 %v753, 0.0
          %v799 = vmax.f32 %v756, 0.0
          %v800 = vmax.f32 %v758, 0.0
          %v801 = vmax.f32 %v761, 0.0
          %v802 = vmax.f32 %v763, 0.0
          %v803 = vmax.f32 %v766, 0.0
          %v804 = vmax.f32 %v768, 0.0
          %v805 = vmax.f32 %v771, 0.0
          %v806 = vmax.f32 %v773, 0.0
          %v807 = vpack.c.bf16 %v776, %v775
          %v808 = vpack.c.bf16 %v778, %v777
          %v809 = vpack.c.bf16 %v780, %v779
          %v810 = vpack.c.bf16 %v782, %v781
          %v811 = vpack.c.bf16 %v784, %v783
          %v812 = vpack.c.bf16 %v786, %v785
          %v813 = vpack.c.bf16 %v788, %v787
          %v814 = vpack.c.bf16 %v790, %v789
          %v815 = vpack.c.bf16 %v792, %v791
          %v816 = vpack.c.bf16 %v794, %v793
          %v817 = vpack.c.bf16 %v796, %v795
          %v818 = vpack.c.bf16 %v798, %v797
          %v819 = vpack.c.bf16 %v800, %v799
          %v820 = vpack.c.bf16 %v802, %v801
          %v821 = vpack.c.bf16 %v804, %v803
          %v822 = vpack.c.bf16 %v806, %v805
          %v823 = vld [vmem:[#allocation8] sm:$0xf]
          %v824 = vld [vmem:[#allocation8 + $0x4] sm:$0xf]
          %v825 = vld [vmem:[#allocation8 + $0x8] sm:$0xf]
          %v826 = vld [vmem:[#allocation8 + $0xc] sm:$0xf]
          %v827 = vld [vmem:[#allocation8 + $0x10] sm:$0xf]
          %v828 = vld [vmem:[#allocation8 + $0x14] sm:$0xf]
          %v829 = vld [vmem:[#allocation8 + $0x18] sm:$0xf]
          %v830 = vld [vmem:[#allocation8 + $0x1c] sm:$0xf]
          %v831 = vld [vmem:[#allocation8 + $0x20] sm:$0xf]
          %v832 = vld [vmem:[#allocation8 + $0x24] sm:$0xf]
          %v833 = vld [vmem:[#allocation8 + $0x28] sm:$0xf]
          %v834 = vld [vmem:[#allocation8 + $0x2c] sm:$0xf]
          %v835 = vld [vmem:[#allocation8 + $0x30] sm:$0xf]
          %v836 = vld [vmem:[#allocation8 + $0x34] sm:$0xf]
          %v837 = vld [vmem:[#allocation8 + $0x38] sm:$0xf]
          %v838 = vld [vmem:[#allocation8 + $0x3c] sm:$0xf]
          %v855 = vunpack.c.l.b16 %v823
          %v856 = vunpack.c.l.b16 %v824
          %v857 = vunpack.c.l.b16 %v825
          %v858 = vunpack.c.l.b16 %v826
          %v859 = vunpack.c.l.b16 %v827
          %v860 = vunpack.c.l.b16 %v828
          %v861 = vunpack.c.l.b16 %v829
          %v862 = vunpack.c.l.b16 %v830
          %v863 = vunpack.c.l.b16 %v831
          %v864 = vunpack.c.l.b16 %v832
          %v865 = vunpack.c.l.b16 %v833
          %v866 = vunpack.c.l.b16 %v834
          %v867 = vunpack.c.l.b16 %v835
          %v868 = vunpack.c.l.b16 %v836
          %v869 = vunpack.c.l.b16 %v837
          %v870 = vunpack.c.l.b16 %v838
          %v871 = vpack.c.b16 %v856, %v855
          %v872 = vpack.c.b16 %v858, %v857
          %v873 = vpack.c.b16 %v860, %v859
          %v874 = vpack.c.b16 %v862, %v861
          %v875 = vpack.c.b16 %v864, %v863
          %v876 = vpack.c.b16 %v866, %v865
          %v877 = vpack.c.b16 %v868, %v867
          %v878 = vpack.c.b16 %v870, %v869
          %887 = vmatpush.bf16.msra.mxu0 %v878
          %888 = vmatpush.bf16.msra.mxu0 %v877
          %889 = vmatpush.bf16.msra.mxu0 %v876
          %890 = vmatpush.bf16.msra.mxu0 %v875
          %891 = vmatpush.bf16.msra.mxu0 %v874
          %892 = vmatpush.bf16.msra.mxu0 %v873
          %893 = vmatpush.bf16.msra.mxu0 %v872
          %894 = vmatpush.bf16.msra.mxu0 %v871
          %895 = vmatmul.bf16.gmra.mxu0 %v807
          %v896 = vpop.f32.mrf.mxu0
          %v897 = vadd.f32 0.0, %v896
          %v898 = vpop.f32.mrf.mxu0
          %v899 = vadd.f32 0.0, %v898
          %900 = vmatmul.bf16.gmra.mxu0 %v808
          %v901 = vpop.f32.mrf.mxu0
          %v902 = vadd.f32 0.0, %v901
          %v903 = vpop.f32.mrf.mxu0
          %v904 = vadd.f32 0.0, %v903
          %905 = vmatmul.bf16.gmra.mxu0 %v809
          %v906 = vpop.f32.mrf.mxu0
          %v907 = vadd.f32 0.0, %v906
          %v908 = vpop.f32.mrf.mxu0
          %v909 = vadd.f32 0.0, %v908
          %910 = vmatmul.bf16.gmra.mxu0 %v810
          %v911 = vpop.f32.mrf.mxu0
          %v912 = vadd.f32 0.0, %v911
          %v913 = vpop.f32.mrf.mxu0
          %v914 = vadd.f32 0.0, %v913
          %915 = vmatmul.bf16.gmra.mxu0 %v811
          %v916 = vpop.f32.mrf.mxu0
          %v917 = vadd.f32 0.0, %v916
          %v918 = vpop.f32.mrf.mxu0
          %v919 = vadd.f32 0.0, %v918
          %920 = vmatmul.bf16.gmra.mxu0 %v812
          %v921 = vpop.f32.mrf.mxu0
          %v922 = vadd.f32 0.0, %v921
          %v923 = vpop.f32.mrf.mxu0
          %v924 = vadd.f32 0.0, %v923
          %925 = vmatmul.bf16.gmra.mxu0 %v813
          %v926 = vpop.f32.mrf.mxu0
          %v927 = vadd.f32 0.0, %v926
          %v928 = vpop.f32.mrf.mxu0
          %v929 = vadd.f32 0.0, %v928
          %930 = vmatmul.bf16.gmra.mxu0 %v814
          %v931 = vpop.f32.mrf.mxu0
          %v932 = vadd.f32 0.0, %v931
          %v933 = vpop.f32.mrf.mxu0
          %v934 = vadd.f32 0.0, %v933
          %935 = vmatmul.bf16.gmra.mxu0 %v815
          %v936 = vpop.f32.mrf.mxu0
          %v937 = vadd.f32 0.0, %v936
          %v938 = vpop.f32.mrf.mxu0
          %v939 = vadd.f32 0.0, %v938
          %940 = vmatmul.bf16.gmra.mxu0 %v816
          %v941 = vpop.f32.mrf.mxu0
          %v942 = vadd.f32 0.0, %v941
          %v943 = vpop.f32.mrf.mxu0
          %v944 = vadd.f32 0.0, %v943
          %945 = vmatmul.bf16.gmra.mxu0 %v817
          %v946 = vpop.f32.mrf.mxu0
          %v947 = vadd.f32 0.0, %v946
          %v948 = vpop.f32.mrf.mxu0
          %v949 = vadd.f32 0.0, %v948
          %950 = vmatmul.bf16.gmra.mxu0 %v818
          %v951 = vpop.f32.mrf.mxu0
          %v952 = vadd.f32 0.0, %v951
          %v953 = vpop.f32.mrf.mxu0
          %v954 = vadd.f32 0.0, %v953
          %955 = vmatmul.bf16.gmra.mxu0 %v819
          %v956 = vpop.f32.mrf.mxu0
          %v957 = vadd.f32 0.0, %v956
          %v958 = vpop.f32.mrf.mxu0
          %v959 = vadd.f32 0.0, %v958
          %960 = vmatmul.bf16.gmra.mxu0 %v820
          %v961 = vpop.f32.mrf.mxu0
          %v962 = vadd.f32 0.0, %v961
          %v963 = vpop.f32.mrf.mxu0
          %v964 = vadd.f32 0.0, %v963
          %965 = vmatmul.bf16.gmra.mxu0 %v821
          %v966 = vpop.f32.mrf.mxu0
          %v967 = vadd.f32 0.0, %v966
          %v968 = vpop.f32.mrf.mxu0
          %v969 = vadd.f32 0.0, %v968
          %970 = vmatmul.bf16.gmra.mxu0 %v822
          %v971 = vpop.f32.mrf.mxu0
          %v972 = vadd.f32 0.0, %v971
          %v973 = vpop.f32.mrf.mxu0
          %v974 = vadd.f32 0.0, %v973
          %975 = vdwg.mxu0
          %v976 = vpack.c.bf16 %v897, %v897
          %v977 = vpack.c.bf16 %v899, %v899
          %v978 = vpack.c.bf16 %v902, %v902
          %v979 = vpack.c.bf16 %v904, %v904
          %v980 = vpack.c.bf16 %v907, %v907
          %v981 = vpack.c.bf16 %v909, %v909
          %v982 = vpack.c.bf16 %v912, %v912
          %v983 = vpack.c.bf16 %v914, %v914
          %v984 = vpack.c.bf16 %v917, %v917
          %v985 = vpack.c.bf16 %v919, %v919
          %v986 = vpack.c.bf16 %v922, %v922
          %v987 = vpack.c.bf16 %v924, %v924
          %v988 = vpack.c.bf16 %v927, %v927
          %v989 = vpack.c.bf16 %v929, %v929
          %v990 = vpack.c.bf16 %v932, %v932
          %v991 = vpack.c.bf16 %v934, %v934
          %v992 = vpack.c.bf16 %v937, %v937
          %v993 = vpack.c.bf16 %v939, %v939
          %v994 = vpack.c.bf16 %v942, %v942
          %v995 = vpack.c.bf16 %v944, %v944
          %v996 = vpack.c.bf16 %v947, %v947
          %v997 = vpack.c.bf16 %v949, %v949
          %v998 = vpack.c.bf16 %v952, %v952
          %v999 = vpack.c.bf16 %v954, %v954
          %v1000 = vpack.c.bf16 %v957, %v957
          %v1001 = vpack.c.bf16 %v959, %v959
          %v1002 = vpack.c.bf16 %v962, %v962
          %v1003 = vpack.c.bf16 %v964, %v964
          %v1004 = vpack.c.bf16 %v967, %v967
          %v1005 = vpack.c.bf16 %v969, %v969
          %v1006 = vpack.c.bf16 %v972, %v972
          %v1007 = vpack.c.bf16 %v974, %v974
          %s1008 = smul.addr %s268, 4
          %s1009 = scalar_lea.vmem [#allocation2], %s1008
          %1010 = vst [vmem:[%s1009] sm:$0xf] %v976
          %1011 = vst [vmem:[%s1009 + $0x4] sm:$0xf] %v977
          %1012 = vst [vmem:[%s1009 + $0x8] sm:$0xf] %v978
          %1013 = vst [vmem:[%s1009 + $0xc] sm:$0xf] %v979
          %1014 = vst [vmem:[%s1009 + $0x10] sm:$0xf] %v980
          %1015 = vst [vmem:[%s1009 + $0x14] sm:$0xf] %v981
          %1016 = vst [vmem:[%s1009 + $0x18] sm:$0xf] %v982
          %1017 = vst [vmem:[%s1009 + $0x1c] sm:$0xf] %v983
          %1018 = vst [vmem:[%s1009 + $0x20] sm:$0xf] %v984
          %1019 = vst [vmem:[%s1009 + $0x24] sm:$0xf] %v985
          %1020 = vst [vmem:[%s1009 + $0x28] sm:$0xf] %v986
          %1021 = vst [vmem:[%s1009 + $0x2c] sm:$0xf] %v987
          %1022 = vst [vmem:[%s1009 + $0x30] sm:$0xf] %v988
          %1023 = vst [vmem:[%s1009 + $0x34] sm:$0xf] %v989
          %1024 = vst [vmem:[%s1009 + $0x38] sm:$0xf] %v990
          %1025 = vst [vmem:[%s1009 + $0x3c] sm:$0xf] %v991
          %1026 = vst [vmem:[%s1009 + $0x40] sm:$0xf] %v992
          %1027 = vst [vmem:[%s1009 + $0x44] sm:$0xf] %v993
          %1028 = vst [vmem:[%s1009 + $0x48] sm:$0xf] %v994
          %1029 = vst [vmem:[%s1009 + $0x4c] sm:$0xf] %v995
          %1030 = vst [vmem:[%s1009 + $0x50] sm:$0xf] %v996
          %1031 = vst [vmem:[%s1009 + $0x54] sm:$0xf] %v997
          %1032 = vst [vmem:[%s1009 + $0x58] sm:$0xf] %v998
          %1033 = vst [vmem:[%s1009 + $0x5c] sm:$0xf] %v999
          %1034 = vst [vmem:[%s1009 + $0x60] sm:$0xf] %v1000
          %1035 = vst [vmem:[%s1009 + $0x64] sm:$0xf] %v1001
          %1036 = vst [vmem:[%s1009 + $0x68] sm:$0xf] %v1002
          %1037 = vst [vmem:[%s1009 + $0x6c] sm:$0xf] %v1003
          %1038 = vst [vmem:[%s1009 + $0x70] sm:$0xf] %v1004
          %1039 = vst [vmem:[%s1009 + $0x74] sm:$0xf] %v1005
          %1040 = vst [vmem:[%s1009 + $0x78] sm:$0xf] %v1006
          %1041 = vst [vmem:[%s1009 + $0x7c] sm:$0xf] %v1007
        $region56: #{tpu_custom_call.1} parent=39 // pred_fallthru
          _
        %p1042 = scmp.ge.s32.totalorder %s21, 1
        // Predicated region
        $region57: #{tpu_custom_call.1} parent=39 // pred_check
          %p1043 = pneg %p1042
        $region58: #{tpu_custom_call.1} parent=39 // pred_check_branch
          %1045 = sbr.rel (%p1043) target = $region60
        $region59: #{tpu_custom_call.1} parent=39 // pred_region
          %s1046 = ssub.s32 %s21, 1
          %s1047 = smul.u32 %s1046, 256
          %s1048 = sshra.s32 %s1047, 3
          %s1049 = sand.u32 %s1047, 7
          %s1050 = smul.u32 %s1048, 2
          %s1051 = smul.addr %s1050, 4
          %s1052 = scalar_lea.vmem [#allocation3], %s1051
          %v1053 = vld [vmem:[%s1052] sm:$0xff]
          %v1054 = vld [vmem:[%s1052 + $0x8] sm:$0xff]
          %v1055 = vld [vmem:[%s1052 + $0x10] sm:$0xff]
          %v1056 = vld [vmem:[%s1052 + $0x18] sm:$0xff]
          %v1057 = vld [vmem:[%s1052 + $0x20] sm:$0xff]
          %v1058 = vld [vmem:[%s1052 + $0x28] sm:$0xff]
          %v1059 = vld [vmem:[%s1052 + $0x30] sm:$0xff]
          %v1060 = vld [vmem:[%s1052 + $0x38] sm:$0xff]
          %v1061 = vld [vmem:[%s1052 + $0x40] sm:$0xff]
          %v1062 = vld [vmem:[%s1052 + $0x48] sm:$0xff]
          %v1063 = vld [vmem:[%s1052 + $0x50] sm:$0xff]
          %v1064 = vld [vmem:[%s1052 + $0x58] sm:$0xff]
          %v1065 = vld [vmem:[%s1052 + $0x60] sm:$0xff]
          %v1066 = vld [vmem:[%s1052 + $0x68] sm:$0xff]
          %v1067 = vld [vmem:[%s1052 + $0x70] sm:$0xff]
          %v1068 = vld [vmem:[%s1052 + $0x78] sm:$0xff]
          %v1069 = vld [vmem:[%s1052 + $0x80] sm:$0xff]
          %v1070 = vld [vmem:[%s1052 + $0x88] sm:$0xff]
          %v1071 = vld [vmem:[%s1052 + $0x90] sm:$0xff]
          %v1072 = vld [vmem:[%s1052 + $0x98] sm:$0xff]
          %v1073 = vld [vmem:[%s1052 + $0xa0] sm:$0xff]
          %v1074 = vld [vmem:[%s1052 + $0xa8] sm:$0xff]
          %v1075 = vld [vmem:[%s1052 + $0xb0] sm:$0xff]
          %v1076 = vld [vmem:[%s1052 + $0xb8] sm:$0xff]
          %v1077 = vld [vmem:[%s1052 + $0xc0] sm:$0xff]
          %v1078 = vld [vmem:[%s1052 + $0xc8] sm:$0xff]
          %v1079 = vld [vmem:[%s1052 + $0xd0] sm:$0xff]
          %v1080 = vld [vmem:[%s1052 + $0xd8] sm:$0xff]
          %v1081 = vld [vmem:[%s1052 + $0xe0] sm:$0xff]
          %v1082 = vld [vmem:[%s1052 + $0xe8] sm:$0xff]
          %v1083 = vld [vmem:[%s1052 + $0xf0] sm:$0xff]
          %v1084 = vld [vmem:[%s1052 + $0xf8] sm:$0xff]
          %v1085 = vld [vmem:[#allocation2] sm:$0xf]
          %v1086 = vld [vmem:[#allocation2 + $0x4] sm:$0xf]
          %v1087 = vld [vmem:[#allocation2 + $0x8] sm:$0xf]
          %v1088 = vld [vmem:[#allocation2 + $0xc] sm:$0xf]
          %v1089 = vld [vmem:[#allocation2 + $0x10] sm:$0xf]
          %v1090 = vld [vmem:[#allocation2 + $0x14] sm:$0xf]
          %v1091 = vld [vmem:[#allocation2 + $0x18] sm:$0xf]
          %v1092 = vld [vmem:[#allocation2 + $0x1c] sm:$0xf]
          %v1093 = vld [vmem:[#allocation2 + $0x20] sm:$0xf]
          %v1094 = vld [vmem:[#allocation2 + $0x24] sm:$0xf]
          %v1095 = vld [vmem:[#allocation2 + $0x28] sm:$0xf]
          %v1096 = vld [vmem:[#allocation2 + $0x2c] sm:$0xf]
          %v1097 = vld [vmem:[#allocation2 + $0x30] sm:$0xf]
          %v1098 = vld [vmem:[#allocation2 + $0x34] sm:$0xf]
          %v1099 = vld [vmem:[#allocation2 + $0x38] sm:$0xf]
          %v1100 = vld [vmem:[#allocation2 + $0x3c] sm:$0xf]
          %v1101 = vld [vmem:[#allocation2 + $0x40] sm:$0xf]
          %v1102 = vld [vmem:[#allocation2 + $0x44] sm:$0xf]
          %v1103 = vld [vmem:[#allocation2 + $0x48] sm:$0xf]
          %v1104 = vld [vmem:[#allocation2 + $0x4c] sm:$0xf]
          %v1105 = vld [vmem:[#allocation2 + $0x50] sm:$0xf]
          %v1106 = vld [vmem:[#allocation2 + $0x54] sm:$0xf]
          %v1107 = vld [vmem:[#allocation2 + $0x58] sm:$0xf]
          %v1108 = vld [vmem:[#allocation2 + $0x5c] sm:$0xf]
          %v1109 = vld [vmem:[#allocation2 + $0x60] sm:$0xf]
          %v1110 = vld [vmem:[#allocation2 + $0x64] sm:$0xf]
          %v1111 = vld [vmem:[#allocation2 + $0x68] sm:$0xf]
          %v1112 = vld [vmem:[#allocation2 + $0x6c] sm:$0xf]
          %v1113 = vld [vmem:[#allocation2 + $0x70] sm:$0xf]
          %v1114 = vld [vmem:[#allocation2 + $0x74] sm:$0xf]
          %v1115 = vld [vmem:[#allocation2 + $0x78] sm:$0xf]
          %v1116 = vld [vmem:[#allocation2 + $0x7c] sm:$0xf]
          %v1117 = vld [vmem:[%s4] sm:$0x1]
          %v1119 = vperm.slane %v1117, 0
          %v1153 = vunpack.c.l.b16 %v1053
          %v1154 = vunpack.c.h.b16 %v1053
          %v1155 = vunpack.c.l.b16 %v1054
          %v1156 = vunpack.c.h.b16 %v1054
          %v1157 = vunpack.c.l.b16 %v1055
          %v1158 = vunpack.c.h.b16 %v1055
          %v1159 = vunpack.c.l.b16 %v1056
          %v1160 = vunpack.c.h.b16 %v1056
          %v1161 = vunpack.c.l.b16 %v1057
          %v1162 = vunpack.c.h.b16 %v1057
          %v1163 = vunpack.c.l.b16 %v1058
          %v1164 = vunpack.c.h.b16 %v1058
          %v1165 = vunpack.c.l.b16 %v1059
          %v1166 = vunpack.c.h.b16 %v1059
          %v1167 = vunpack.c.l.b16 %v1060
          %v1168 = vunpack.c.h.b16 %v1060
          %v1169 = vunpack.c.l.b16 %v1061
          %v1170 = vunpack.c.h.b16 %v1061
          %v1171 = vunpack.c.l.b16 %v1062
          %v1172 = vunpack.c.h.b16 %v1062
          %v1173 = vunpack.c.l.b16 %v1063
          %v1174 = vunpack.c.h.b16 %v1063
          %v1175 = vunpack.c.l.b16 %v1064
          %v1176 = vunpack.c.h.b16 %v1064
          %v1177 = vunpack.c.l.b16 %v1065
          %v1178 = vunpack.c.h.b16 %v1065
          %v1179 = vunpack.c.l.b16 %v1066
          %v1180 = vunpack.c.h.b16 %v1066
          %v1181 = vunpack.c.l.b16 %v1067
          %v1182 = vunpack.c.h.b16 %v1067
          %v1183 = vunpack.c.l.b16 %v1068
          %v1184 = vunpack.c.h.b16 %v1068
          %v1185 = vunpack.c.l.b16 %v1069
          %v1186 = vunpack.c.h.b16 %v1069
          %v1187 = vunpack.c.l.b16 %v1070
          %v1188 = vunpack.c.h.b16 %v1070
          %v1189 = vunpack.c.l.b16 %v1071
          %v1190 = vunpack.c.h.b16 %v1071
          %v1191 = vunpack.c.l.b16 %v1072
          %v1192 = vunpack.c.h.b16 %v1072
          %v1193 = vunpack.c.l.b16 %v1073
          %v1194 = vunpack.c.h.b16 %v1073
          %v1195 = vunpack.c.l.b16 %v1074
          %v1196 = vunpack.c.h.b16 %v1074
          %v1197 = vunpack.c.l.b16 %v1075
          %v1198 = vunpack.c.h.b16 %v1075
          %v1199 = vunpack.c.l.b16 %v1076
          %v1200 = vunpack.c.h.b16 %v1076
          %v1201 = vunpack.c.l.b16 %v1077
          %v1202 = vunpack.c.h.b16 %v1077
          %v1203 = vunpack.c.l.b16 %v1078
          %v1204 = vunpack.c.h.b16 %v1078
          %v1205 = vunpack.c.l.b16 %v1079
          %v1206 = vunpack.c.h.b16 %v1079
          %v1207 = vunpack.c.l.b16 %v1080
          %v1208 = vunpack.c.h.b16 %v1080
          %v1209 = vunpack.c.l.b16 %v1081
          %v1210 = vunpack.c.h.b16 %v1081
          %v1211 = vunpack.c.l.b16 %v1082
          %v1212 = vunpack.c.h.b16 %v1082
          %v1213 = vunpack.c.l.b16 %v1083
          %v1214 = vunpack.c.h.b16 %v1083
          %v1215 = vunpack.c.l.b16 %v1084
          %v1216 = vunpack.c.h.b16 %v1084
          %v1217 = vpack.c.b16 %v1155, %v1153
          %v1218 = vpack.c.b16 %v1156, %v1154
          %v1219 = vpack.c.b16 %v1159, %v1157
          %v1220 = vpack.c.b16 %v1160, %v1158
          %v1221 = vpack.c.b16 %v1163, %v1161
          %v1222 = vpack.c.b16 %v1164, %v1162
          %v1223 = vpack.c.b16 %v1167, %v1165
          %v1224 = vpack.c.b16 %v1168, %v1166
          %v1225 = vpack.c.b16 %v1171, %v1169
          %v1226 = vpack.c.b16 %v1172, %v1170
          %v1227 = vpack.c.b16 %v1175, %v1173
          %v1228 = vpack.c.b16 %v1176, %v1174
          %v1229 = vpack.c.b16 %v1179, %v1177
          %v1230 = vpack.c.b16 %v1180, %v1178
          %v1231 = vpack.c.b16 %v1183, %v1181
          %v1232 = vpack.c.b16 %v1184, %v1182
          %v1233 = vpack.c.b16 %v1187, %v1185
          %v1234 = vpack.c.b16 %v1188, %v1186
          %v1235 = vpack.c.b16 %v1191, %v1189
          %v1236 = vpack.c.b16 %v1192, %v1190
          %v1237 = vpack.c.b16 %v1195, %v1193
          %v1238 = vpack.c.b16 %v1196, %v1194
          %v1239 = vpack.c.b16 %v1199, %v1197
          %v1240 = vpack.c.b16 %v1200, %v1198
          %v1241 = vpack.c.b16 %v1203, %v1201
          %v1242 = vpack.c.b16 %v1204, %v1202
          %v1243 = vpack.c.b16 %v1207, %v1205
          %v1244 = vpack.c.b16 %v1208, %v1206
          %v1245 = vpack.c.b16 %v1211, %v1209
          %v1246 = vpack.c.b16 %v1212, %v1210
          %v1247 = vpack.c.b16 %v1215, %v1213
          %v1248 = vpack.c.b16 %v1216, %v1214
          %v1313 = vunpack.c.l.b16 %v1085
          %v1314 = vunpack.c.l.b16 %v1086
          %v1315 = vunpack.c.l.b16 %v1087
          %v1316 = vunpack.c.l.b16 %v1088
          %v1317 = vunpack.c.l.b16 %v1089
          %v1318 = vunpack.c.l.b16 %v1090
          %v1319 = vunpack.c.l.b16 %v1091
          %v1320 = vunpack.c.l.b16 %v1092
          %v1321 = vunpack.c.l.b16 %v1093
          %v1322 = vunpack.c.l.b16 %v1094
          %v1323 = vunpack.c.l.b16 %v1095
          %v1324 = vunpack.c.l.b16 %v1096
          %v1325 = vunpack.c.l.b16 %v1097
          %v1326 = vunpack.c.l.b16 %v1098
          %v1327 = vunpack.c.l.b16 %v1099
          %v1328 = vunpack.c.l.b16 %v1100
          %v1329 = vunpack.c.l.b16 %v1101
          %v1330 = vunpack.c.l.b16 %v1102
          %v1331 = vunpack.c.l.b16 %v1103
          %v1332 = vunpack.c.l.b16 %v1104
          %v1333 = vunpack.c.l.b16 %v1105
          %v1334 = vunpack.c.l.b16 %v1106
          %v1335 = vunpack.c.l.b16 %v1107
          %v1336 = vunpack.c.l.b16 %v1108
          %v1337 = vunpack.c.l.b16 %v1109
          %v1338 = vunpack.c.l.b16 %v1110
          %v1339 = vunpack.c.l.b16 %v1111
          %v1340 = vunpack.c.l.b16 %v1112
          %v1341 = vunpack.c.l.b16 %v1113
          %v1342 = vunpack.c.l.b16 %v1114
          %v1343 = vunpack.c.l.b16 %v1115
          %v1344 = vunpack.c.l.b16 %v1116
          %v1345 = vpack.c.b16 %v1314, %v1313
          %v1346 = vpack.c.b16 %v1316, %v1315
          %v1347 = vpack.c.b16 %v1318, %v1317
          %v1348 = vpack.c.b16 %v1320, %v1319
          %v1349 = vpack.c.b16 %v1322, %v1321
          %v1350 = vpack.c.b16 %v1324, %v1323
          %v1351 = vpack.c.b16 %v1326, %v1325
          %v1352 = vpack.c.b16 %v1328, %v1327
          %v1353 = vpack.c.b16 %v1330, %v1329
          %v1354 = vpack.c.b16 %v1332, %v1331
          %v1355 = vpack.c.b16 %v1334, %v1333
          %v1356 = vpack.c.b16 %v1336, %v1335
          %v1357 = vpack.c.b16 %v1338, %v1337
          %v1358 = vpack.c.b16 %v1340, %v1339
          %v1359 = vpack.c.b16 %v1342, %v1341
          %v1360 = vpack.c.b16 %v1344, %v1343
          %1377 = vmatpush.bf16.msra.mxu0 %v1352
          %1378 = vmatpush.bf16.msra.mxu0 %v1351
          %1379 = vmatpush.bf16.msra.mxu0 %v1350
          %1380 = vmatpush.bf16.msra.mxu0 %v1349
          %1381 = vmatpush.bf16.msra.mxu0 %v1348
          %1382 = vmatpush.bf16.msra.mxu0 %v1347
          %1383 = vmatpush.bf16.msra.mxu0 %v1346
          %1384 = vmatpush.bf16.msra.mxu0 %v1345
          %1385 = vmatmul.bf16.gmra.mxu0 %v1217
          %v1386 = vpop.f32.mrf.mxu0
          %v1387 = vadd.f32 %v1119, %v1386
          %v1388 = vpop.f32.mrf.mxu0
          %v1389 = vadd.f32 %v1119, %v1388
          %1390 = vmatmul.bf16.gmra.mxu0 %v1219
          %v1391 = vpop.f32.mrf.mxu0
          %v1392 = vadd.f32 %v1119, %v1391
          %v1393 = vpop.f32.mrf.mxu0
          %v1394 = vadd.f32 %v1119, %v1393
          %1395 = vmatmul.bf16.gmra.mxu0 %v1221
          %v1396 = vpop.f32.mrf.mxu0
          %v1397 = vadd.f32 %v1119, %v1396
          %v1398 = vpop.f32.mrf.mxu0
          %v1399 = vadd.f32 %v1119, %v1398
          %1400 = vmatmul.bf16.gmra.mxu0 %v1223
          %v1401 = vpop.f32.mrf.mxu0
          %v1402 = vadd.f32 %v1119, %v1401
          %v1403 = vpop.f32.mrf.mxu0
          %v1404 = vadd.f32 %v1119, %v1403
          %1405 = vmatmul.bf16.gmra.mxu0 %v1225
          %v1406 = vpop.f32.mrf.mxu0
          %v1407 = vadd.f32 %v1119, %v1406
          %v1408 = vpop.f32.mrf.mxu0
          %v1409 = vadd.f32 %v1119, %v1408
          %1410 = vmatmul.bf16.gmra.mxu0 %v1227
          %v1411 = vpop.f32.mrf.mxu0
          %v1412 = vadd.f32 %v1119, %v1411
          %v1413 = vpop.f32.mrf.mxu0
          %v1414 = vadd.f32 %v1119, %v1413
          %1415 = vmatmul.bf16.gmra.mxu0 %v1229
          %v1416 = vpop.f32.mrf.mxu0
          %v1417 = vadd.f32 %v1119, %v1416
          %v1418 = vpop.f32.mrf.mxu0
          %v1419 = vadd.f32 %v1119, %v1418
          %1420 = vmatmul.bf16.gmra.mxu0 %v1231
          %v1421 = vpop.f32.mrf.mxu0
          %v1422 = vadd.f32 %v1119, %v1421
          %v1423 = vpop.f32.mrf.mxu0
          %v1424 = vadd.f32 %v1119, %v1423
          %1425 = vmatmul.bf16.gmra.mxu0 %v1233
          %v1426 = vpop.f32.mrf.mxu0
          %v1427 = vadd.f32 %v1119, %v1426
          %v1428 = vpop.f32.mrf.mxu0
          %v1429 = vadd.f32 %v1119, %v1428
          %1430 = vmatmul.bf16.gmra.mxu0 %v1235
          %v1431 = vpop.f32.mrf.mxu0
          %v1432 = vadd.f32 %v1119, %v1431
          %v1433 = vpop.f32.mrf.mxu0
          %v1434 = vadd.f32 %v1119, %v1433
          %1435 = vmatmul.bf16.gmra.mxu0 %v1237
          %v1436 = vpop.f32.mrf.mxu0
          %v1437 = vadd.f32 %v1119, %v1436
          %v1438 = vpop.f32.mrf.mxu0
          %v1439 = vadd.f32 %v1119, %v1438
          %1440 = vmatmul.bf16.gmra.mxu0 %v1239
          %v1441 = vpop.f32.mrf.mxu0
          %v1442 = vadd.f32 %v1119, %v1441
          %v1443 = vpop.f32.mrf.mxu0
          %v1444 = vadd.f32 %v1119, %v1443
          %1445 = vmatmul.bf16.gmra.mxu0 %v1241
          %v1446 = vpop.f32.mrf.mxu0
          %v1447 = vadd.f32 %v1119, %v1446
          %v1448 = vpop.f32.mrf.mxu0
          %v1449 = vadd.f32 %v1119, %v1448
          %1450 = vmatmul.bf16.gmra.mxu0 %v1243
          %v1451 = vpop.f32.mrf.mxu0
          %v1452 = vadd.f32 %v1119, %v1451
          %v1453 = vpop.f32.mrf.mxu0
          %v1454 = vadd.f32 %v1119, %v1453
          %1455 = vmatmul.bf16.gmra.mxu0 %v1245
          %v1456 = vpop.f32.mrf.mxu0
          %v1457 = vadd.f32 %v1119, %v1456
          %v1458 = vpop.f32.mrf.mxu0
          %v1459 = vadd.f32 %v1119, %v1458
          %1460 = vmatmul.bf16.gmra.mxu0 %v1247
          %v1461 = vpop.f32.mrf.mxu0
          %v1462 = vadd.f32 %v1119, %v1461
          %v1463 = vpop.f32.mrf.mxu0
          %v1464 = vadd.f32 %v1119, %v1463
          %1465 = vdwg.mxu0
          %1466 = vmatpush.bf16.msra.mxu0 %v1360
          %1467 = vmatpush.bf16.msra.mxu0 %v1359
          %1468 = vmatpush.bf16.msra.mxu0 %v1358
          %1469 = vmatpush.bf16.msra.mxu0 %v1357
          %1470 = vmatpush.bf16.msra.mxu0 %v1356
          %1471 = vmatpush.bf16.msra.mxu0 %v1355
          %1472 = vmatpush.bf16.msra.mxu0 %v1354
          %1473 = vmatpush.bf16.msra.mxu0 %v1353
          %1474 = vmatmul.bf16.gmra.mxu0 %v1218
          %v1475 = vpop.f32.mrf.mxu0
          %v1476 = vadd.f32 %v1387, %v1475
          %v1477 = vpop.f32.mrf.mxu0
          %v1478 = vadd.f32 %v1389, %v1477
          %1479 = vmatmul.bf16.gmra.mxu0 %v1220
          %v1480 = vpop.f32.mrf.mxu0
          %v1481 = vadd.f32 %v1392, %v1480
          %v1482 = vpop.f32.mrf.mxu0
          %v1483 = vadd.f32 %v1394, %v1482
          %1484 = vmatmul.bf16.gmra.mxu0 %v1222
          %v1485 = vpop.f32.mrf.mxu0
          %v1486 = vadd.f32 %v1397, %v1485
          %v1487 = vpop.f32.mrf.mxu0
          %v1488 = vadd.f32 %v1399, %v1487
          %1489 = vmatmul.bf16.gmra.mxu0 %v1224
          %v1490 = vpop.f32.mrf.mxu0
          %v1491 = vadd.f32 %v1402, %v1490
          %v1492 = vpop.f32.mrf.mxu0
          %v1493 = vadd.f32 %v1404, %v1492
          %1494 = vmatmul.bf16.gmra.mxu0 %v1226
          %v1495 = vpop.f32.mrf.mxu0
          %v1496 = vadd.f32 %v1407, %v1495
          %v1497 = vpop.f32.mrf.mxu0
          %v1498 = vadd.f32 %v1409, %v1497
          %1499 = vmatmul.bf16.gmra.mxu0 %v1228
          %v1500 = vpop.f32.mrf.mxu0
          %v1501 = vadd.f32 %v1412, %v1500
          %v1502 = vpop.f32.mrf.mxu0
          %v1503 = vadd.f32 %v1414, %v1502
          %1504 = vmatmul.bf16.gmra.mxu0 %v1230
          %v1505 = vpop.f32.mrf.mxu0
          %v1506 = vadd.f32 %v1417, %v1505
          %v1507 = vpop.f32.mrf.mxu0
          %v1508 = vadd.f32 %v1419, %v1507
          %1509 = vmatmul.bf16.gmra.mxu0 %v1232
          %v1510 = vpop.f32.mrf.mxu0
          %v1511 = vadd.f32 %v1422, %v1510
          %v1512 = vpop.f32.mrf.mxu0
          %v1513 = vadd.f32 %v1424, %v1512
          %1514 = vmatmul.bf16.gmra.mxu0 %v1234
          %v1515 = vpop.f32.mrf.mxu0
          %v1516 = vadd.f32 %v1427, %v1515
          %v1517 = vpop.f32.mrf.mxu0
          %v1518 = vadd.f32 %v1429, %v1517
          %1519 = vmatmul.bf16.gmra.mxu0 %v1236
          %v1520 = vpop.f32.mrf.mxu0
          %v1521 = vadd.f32 %v1432, %v1520
          %v1522 = vpop.f32.mrf.mxu0
          %v1523 = vadd.f32 %v1434, %v1522
          %1524 = vmatmul.bf16.gmra.mxu0 %v1238
          %v1525 = vpop.f32.mrf.mxu0
          %v1526 = vadd.f32 %v1437, %v1525
          %v1527 = vpop.f32.mrf.mxu0
          %v1528 = vadd.f32 %v1439, %v1527
          %1529 = vmatmul.bf16.gmra.mxu0 %v1240
          %v1530 = vpop.f32.mrf.mxu0
          %v1531 = vadd.f32 %v1442, %v1530
          %v1532 = vpop.f32.mrf.mxu0
          %v1533 = vadd.f32 %v1444, %v1532
          %1534 = vmatmul.bf16.gmra.mxu0 %v1242
          %v1535 = vpop.f32.mrf.mxu0
          %v1536 = vadd.f32 %v1447, %v1535
          %v1537 = vpop.f32.mrf.mxu0
          %v1538 = vadd.f32 %v1449, %v1537
          %1539 = vmatmul.bf16.gmra.mxu0 %v1244
          %v1540 = vpop.f32.mrf.mxu0
          %v1541 = vadd.f32 %v1452, %v1540
          %v1542 = vpop.f32.mrf.mxu0
          %v1543 = vadd.f32 %v1454, %v1542
          %1544 = vmatmul.bf16.gmra.mxu0 %v1246
          %v1545 = vpop.f32.mrf.mxu0
          %v1546 = vadd.f32 %v1457, %v1545
          %v1547 = vpop.f32.mrf.mxu0
          %v1548 = vadd.f32 %v1459, %v1547
          %1549 = vmatmul.bf16.gmra.mxu0 %v1248
          %v1550 = vpop.f32.mrf.mxu0
          %v1551 = vadd.f32 %v1462, %v1550
          %v1552 = vpop.f32.mrf.mxu0
          %v1553 = vadd.f32 %v1464, %v1552
          %1554 = vdwg.mxu0
          %1555 = vmax.xlane.f32.xlu0 %v1476
          %v1556 = vpop.xlane.xlu0 %1555
          %1557 = vmax.xlane.f32.xlu0 %v1478
          %v1558 = vpop.xlane.xlu0 %1557
          %1559 = vmax.xlane.f32.xlu0 %v1481
          %v1560 = vpop.xlane.xlu0 %1559
          %1561 = vmax.xlane.f32.xlu0 %v1483
          %v1562 = vpop.xlane.xlu0 %1561
          %1563 = vmax.xlane.f32.xlu0 %v1486
          %v1564 = vpop.xlane.xlu0 %1563
          %1565 = vmax.xlane.f32.xlu0 %v1488
          %v1566 = vpop.xlane.xlu0 %1565
          %1567 = vmax.xlane.f32.xlu0 %v1491
          %v1568 = vpop.xlane.xlu0 %1567
          %1569 = vmax.xlane.f32.xlu0 %v1493
          %v1570 = vpop.xlane.xlu0 %1569
          %1571 = vmax.xlane.f32.xlu0 %v1496
          %v1572 = vpop.xlane.xlu0 %1571
          %1573 = vmax.xlane.f32.xlu0 %v1498
          %v1574 = vpop.xlane.xlu0 %1573
          %1575 = vmax.xlane.f32.xlu0 %v1501
          %v1576 = vpop.xlane.xlu0 %1575
          %1577 = vmax.xlane.f32.xlu0 %v1503
          %v1578 = vpop.xlane.xlu0 %1577
          %1579 = vmax.xlane.f32.xlu0 %v1506
          %v1580 = vpop.xlane.xlu0 %1579
          %1581 = vmax.xlane.f32.xlu0 %v1508
          %v1582 = vpop.xlane.xlu0 %1581
          %1583 = vmax.xlane.f32.xlu0 %v1511
          %v1584 = vpop.xlane.xlu0 %1583
          %1585 = vmax.xlane.f32.xlu0 %v1513
          %v1586 = vpop.xlane.xlu0 %1585
          %1587 = vmax.xlane.f32.xlu0 %v1516
          %v1588 = vpop.xlane.xlu0 %1587
          %1589 = vmax.xlane.f32.xlu0 %v1518
          %v1590 = vpop.xlane.xlu0 %1589
          %1591 = vmax.xlane.f32.xlu0 %v1521
          %v1592 = vpop.xlane.xlu0 %1591
          %1593 = vmax.xlane.f32.xlu0 %v1523
          %v1594 = vpop.xlane.xlu0 %1593
          %1595 = vmax.xlane.f32.xlu0 %v1526
          %v1596 = vpop.xlane.xlu0 %1595
          %1597 = vmax.xlane.f32.xlu0 %v1528
          %v1598 = vpop.xlane.xlu0 %1597
          %1599 = vmax.xlane.f32.xlu0 %v1531
          %v1600 = vpop.xlane.xlu0 %1599
          %1601 = vmax.xlane.f32.xlu0 %v1533
          %v1602 = vpop.xlane.xlu0 %1601
          %1603 = vmax.xlane.f32.xlu0 %v1536
          %v1604 = vpop.xlane.xlu0 %1603
          %1605 = vmax.xlane.f32.xlu0 %v1538
          %v1606 = vpop.xlane.xlu0 %1605
          %1607 = vmax.xlane.f32.xlu0 %v1541
          %v1608 = vpop.xlane.xlu0 %1607
          %1609 = vmax.xlane.f32.xlu0 %v1543
          %v1610 = vpop.xlane.xlu0 %1609
          %1611 = vmax.xlane.f32.xlu0 %v1546
          %v1612 = vpop.xlane.xlu0 %1611
          %1613 = vmax.xlane.f32.xlu0 %v1548
          %v1614 = vpop.xlane.xlu0 %1613
          %1615 = vmax.xlane.f32.xlu0 %v1551
          %v1616 = vpop.xlane.xlu0 %1615
          %1617 = vmax.xlane.f32.xlu0 %v1553
          %v1618 = vpop.xlane.xlu0 %1617
          %v1619 = vsub.f32 %v1476, %v1556
          %v1620 = vsub.f32 %v1478, %v1558
          %v1621 = vsub.f32 %v1481, %v1560
          %v1622 = vsub.f32 %v1483, %v1562
          %v1623 = vsub.f32 %v1486, %v1564
          %v1624 = vsub.f32 %v1488, %v1566
          %v1625 = vsub.f32 %v1491, %v1568
          %v1626 = vsub.f32 %v1493, %v1570
          %v1627 = vsub.f32 %v1496, %v1572
          %v1628 = vsub.f32 %v1498, %v1574
          %v1629 = vsub.f32 %v1501, %v1576
          %v1630 = vsub.f32 %v1503, %v1578
          %v1631 = vsub.f32 %v1506, %v1580
          %v1632 = vsub.f32 %v1508, %v1582
          %v1633 = vsub.f32 %v1511, %v1584
          %v1634 = vsub.f32 %v1513, %v1586
          %v1635 = vsub.f32 %v1516, %v1588
          %v1636 = vsub.f32 %v1518, %v1590
          %v1637 = vsub.f32 %v1521, %v1592
          %v1638 = vsub.f32 %v1523, %v1594
          %v1639 = vsub.f32 %v1526, %v1596
          %v1640 = vsub.f32 %v1528, %v1598
          %v1641 = vsub.f32 %v1531, %v1600
          %v1642 = vsub.f32 %v1533, %v1602
          %v1643 = vsub.f32 %v1536, %v1604
          %v1644 = vsub.f32 %v1538, %v1606
          %v1645 = vsub.f32 %v1541, %v1608
          %v1646 = vsub.f32 %v1543, %v1610
          %v1647 = vsub.f32 %v1546, %v1612
          %v1648 = vsub.f32 %v1548, %v1614
          %v1649 = vsub.f32 %v1551, %v1616
          %v1650 = vsub.f32 %v1553, %v1618
          %v1651 = vmul.f32 %v1619, 1.442695
          %v1652 = vpow.pop %v1651
          %v1653 = vmul.f32 %v1620, 1.442695
          %v1654 = vpow.pop %v1653
          %v1655 = vmul.f32 %v1621, 1.442695
          %v1656 = vpow.pop %v1655
          %v1657 = vmul.f32 %v1622, 1.442695
          %v1658 = vpow.pop %v1657
          %v1659 = vmul.f32 %v1623, 1.442695
          %v1660 = vpow.pop %v1659
          %v1661 = vmul.f32 %v1624, 1.442695
          %v1662 = vpow.pop %v1661
          %v1663 = vmul.f32 %v1625, 1.442695
          %v1664 = vpow.pop %v1663
          %v1665 = vmul.f32 %v1626, 1.442695
          %v1666 = vpow.pop %v1665
          %v1667 = vmul.f32 %v1627, 1.442695
          %v1668 = vpow.pop %v1667
          %v1669 = vmul.f32 %v1628, 1.442695
          %v1670 = vpow.pop %v1669
          %v1671 = vmul.f32 %v1629, 1.442695
          %v1672 = vpow.pop %v1671
          %v1673 = vmul.f32 %v1630, 1.442695
          %v1674 = vpow.pop %v1673
          %v1675 = vmul.f32 %v1631, 1.442695
          %v1676 = vpow.pop %v1675
          %v1677 = vmul.f32 %v1632, 1.442695
          %v1678 = vpow.pop %v1677
          %v1679 = vmul.f32 %v1633, 1.442695
          %v1680 = vpow.pop %v1679
          %v1681 = vmul.f32 %v1634, 1.442695
          %v1682 = vpow.pop %v1681
          %v1683 = vmul.f32 %v1635, 1.442695
          %v1684 = vpow.pop %v1683
          %v1685 = vmul.f32 %v1636, 1.442695
          %v1686 = vpow.pop %v1685
          %v1687 = vmul.f32 %v1637, 1.442695
          %v1688 = vpow.pop %v1687
          %v1689 = vmul.f32 %v1638, 1.442695
          %v1690 = vpow.pop %v1689
          %v1691 = vmul.f32 %v1639, 1.442695
          %v1692 = vpow.pop %v1691
          %v1693 = vmul.f32 %v1640, 1.442695
          %v1694 = vpow.pop %v1693
          %v1695 = vmul.f32 %v1641, 1.442695
          %v1696 = vpow.pop %v1695
          %v1697 = vmul.f32 %v1642, 1.442695
          %v1698 = vpow.pop %v1697
          %v1699 = vmul.f32 %v1643, 1.442695
          %v1700 = vpow.pop %v1699
          %v1701 = vmul.f32 %v1644, 1.442695
          %v1702 = vpow.pop %v1701
          %v1703 = vmul.f32 %v1645, 1.442695
          %v1704 = vpow.pop %v1703
          %v1705 = vmul.f32 %v1646, 1.442695
          %v1706 = vpow.pop %v1705
          %v1707 = vmul.f32 %v1647, 1.442695
          %v1708 = vpow.pop %v1707
          %v1709 = vmul.f32 %v1648, 1.442695
          %v1710 = vpow.pop %v1709
          %v1711 = vmul.f32 %v1649, 1.442695
          %v1712 = vpow.pop %v1711
          %v1713 = vmul.f32 %v1650, 1.442695
          %v1714 = vpow.pop %v1713
          %1715 = vadd.xlane.f32.xlu0 %v1652
          %v1716 = vpop.xlane.xlu0 %1715
          %1717 = vadd.xlane.f32.xlu0 %v1654
          %v1718 = vpop.xlane.xlu0 %1717
          %1719 = vadd.xlane.f32.xlu0 %v1656
          %v1720 = vpop.xlane.xlu0 %1719
          %1721 = vadd.xlane.f32.xlu0 %v1658
          %v1722 = vpop.xlane.xlu0 %1721
          %1723 = vadd.xlane.f32.xlu0 %v1660
          %v1724 = vpop.xlane.xlu0 %1723
          %1725 = vadd.xlane.f32.xlu0 %v1662
          %v1726 = vpop.xlane.xlu0 %1725
          %1727 = vadd.xlane.f32.xlu0 %v1664
          %v1728 = vpop.xlane.xlu0 %1727
          %1729 = vadd.xlane.f32.xlu0 %v1666
          %v1730 = vpop.xlane.xlu0 %1729
          %1731 = vadd.xlane.f32.xlu0 %v1668
          %v1732 = vpop.xlane.xlu0 %1731
          %1733 = vadd.xlane.f32.xlu0 %v1670
          %v1734 = vpop.xlane.xlu0 %1733
          %1735 = vadd.xlane.f32.xlu0 %v1672
          %v1736 = vpop.xlane.xlu0 %1735
          %1737 = vadd.xlane.f32.xlu0 %v1674
          %v1738 = vpop.xlane.xlu0 %1737
          %1739 = vadd.xlane.f32.xlu0 %v1676
          %v1740 = vpop.xlane.xlu0 %1739
          %1741 = vadd.xlane.f32.xlu0 %v1678
          %v1742 = vpop.xlane.xlu0 %1741
          %1743 = vadd.xlane.f32.xlu0 %v1680
          %v1744 = vpop.xlane.xlu0 %1743
          %1745 = vadd.xlane.f32.xlu0 %v1682
          %v1746 = vpop.xlane.xlu0 %1745
          %1747 = vadd.xlane.f32.xlu0 %v1684
          %v1748 = vpop.xlane.xlu0 %1747
          %1749 = vadd.xlane.f32.xlu0 %v1686
          %v1750 = vpop.xlane.xlu0 %1749
          %1751 = vadd.xlane.f32.xlu0 %v1688
          %v1752 = vpop.xlane.xlu0 %1751
          %1753 = vadd.xlane.f32.xlu0 %v1690
          %v1754 = vpop.xlane.xlu0 %1753
          %1755 = vadd.xlane.f32.xlu0 %v1692
          %v1756 = vpop.xlane.xlu0 %1755
          %1757 = vadd.xlane.f32.xlu0 %v1694
          %v1758 = vpop.xlane.xlu0 %1757
          %1759 = vadd.xlane.f32.xlu0 %v1696
          %v1760 = vpop.xlane.xlu0 %1759
          %1761 = vadd.xlane.f32.xlu0 %v1698
          %v1762 = vpop.xlane.xlu0 %1761
          %1763 = vadd.xlane.f32.xlu0 %v1700
          %v1764 = vpop.xlane.xlu0 %1763
          %1765 = vadd.xlane.f32.xlu0 %v1702
          %v1766 = vpop.xlane.xlu0 %1765
          %1767 = vadd.xlane.f32.xlu0 %v1704
          %v1768 = vpop.xlane.xlu0 %1767
          %1769 = vadd.xlane.f32.xlu0 %v1706
          %v1770 = vpop.xlane.xlu0 %1769
          %1771 = vadd.xlane.f32.xlu0 %v1708
          %v1772 = vpop.xlane.xlu0 %1771
          %1773 = vadd.xlane.f32.xlu0 %v1710
          %v1774 = vpop.xlane.xlu0 %1773
          %1775 = vadd.xlane.f32.xlu0 %v1712
          %v1776 = vpop.xlane.xlu0 %1775
          %1777 = vadd.xlane.f32.xlu0 %v1714
          %v1778 = vpop.xlane.xlu0 %1777
          %v1779 = vlog2.pop %v1716
          %v1780 = vmul.f32 %v1779, 0.6931472
          %v1781 = vlog2.pop %v1718
          %v1782 = vmul.f32 %v1781, 0.6931472
          %v1783 = vlog2.pop %v1720
          %v1784 = vmul.f32 %v1783, 0.6931472
          %v1785 = vlog2.pop %v1722
          %v1786 = vmul.f32 %v1785, 0.6931472
          %v1787 = vlog2.pop %v1724
          %v1788 = vmul.f32 %v1787, 0.6931472
          %v1789 = vlog2.pop %v1726
          %v1790 = vmul.f32 %v1789, 0.6931472
          %v1791 = vlog2.pop %v1728
          %v1792 = vmul.f32 %v1791, 0.6931472
          %v1793 = vlog2.pop %v1730
          %v1794 = vmul.f32 %v1793, 0.6931472
          %v1795 = vlog2.pop %v1732
          %v1796 = vmul.f32 %v1795, 0.6931472
          %v1797 = vlog2.pop %v1734
          %v1798 = vmul.f32 %v1797, 0.6931472
          %v1799 = vlog2.pop %v1736
          %v1800 = vmul.f32 %v1799, 0.6931472
          %v1801 = vlog2.pop %v1738
          %v1802 = vmul.f32 %v1801, 0.6931472
          %v1803 = vlog2.pop %v1740
          %v1804 = vmul.f32 %v1803, 0.6931472
          %v1805 = vlog2.pop %v1742
          %v1806 = vmul.f32 %v1805, 0.6931472
          %v1807 = vlog2.pop %v1744
          %v1808 = vmul.f32 %v1807, 0.6931472
          %v1809 = vlog2.pop %v1746
          %v1810 = vmul.f32 %v1809, 0.6931472
          %v1811 = vlog2.pop %v1748
          %v1812 = vmul.f32 %v1811, 0.6931472
          %v1813 = vlog2.pop %v1750
          %v1814 = vmul.f32 %v1813, 0.6931472
          %v1815 = vlog2.pop %v1752
          %v1816 = vmul.f32 %v1815, 0.6931472
          %v1817 = vlog2.pop %v1754
          %v1818 = vmul.f32 %v1817, 0.6931472
          %v1819 = vlog2.pop %v1756
          %v1820 = vmul.f32 %v1819, 0.6931472
          %v1821 = vlog2.pop %v1758
          %v1822 = vmul.f32 %v1821, 0.6931472
          %v1823 = vlog2.pop %v1760
          %v1824 = vmul.f32 %v1823, 0.6931472
          %v1825 = vlog2.pop %v1762
          %v1826 = vmul.f32 %v1825, 0.6931472
          %v1827 = vlog2.pop %v1764
          %v1828 = vmul.f32 %v1827, 0.6931472
          %v1829 = vlog2.pop %v1766
          %v1830 = vmul.f32 %v1829, 0.6931472
          %v1831 = vlog2.pop %v1768
          %v1832 = vmul.f32 %v1831, 0.6931472
          %v1833 = vlog2.pop %v1770
          %v1834 = vmul.f32 %v1833, 0.6931472
          %v1835 = vlog2.pop %v1772
          %v1836 = vmul.f32 %v1835, 0.6931472
          %v1837 = vlog2.pop %v1774
          %v1838 = vmul.f32 %v1837, 0.6931472
          %v1839 = vlog2.pop %v1776
          %v1840 = vmul.f32 %v1839, 0.6931472
          %v1841 = vlog2.pop %v1778
          %v1842 = vmul.f32 %v1841, 0.6931472
          %v1843 = vsub.f32 %v1619, %v1780
          %v1844 = vsub.f32 %v1620, %v1782
          %v1845 = vsub.f32 %v1621, %v1784
          %v1846 = vsub.f32 %v1622, %v1786
          %v1847 = vsub.f32 %v1623, %v1788
          %v1848 = vsub.f32 %v1624, %v1790
          %v1849 = vsub.f32 %v1625, %v1792
          %v1850 = vsub.f32 %v1626, %v1794
          %v1851 = vsub.f32 %v1627, %v1796
          %v1852 = vsub.f32 %v1628, %v1798
          %v1853 = vsub.f32 %v1629, %v1800
          %v1854 = vsub.f32 %v1630, %v1802
          %v1855 = vsub.f32 %v1631, %v1804
          %v1856 = vsub.f32 %v1632, %v1806
          %v1857 = vsub.f32 %v1633, %v1808
          %v1858 = vsub.f32 %v1634, %v1810
          %v1859 = vsub.f32 %v1635, %v1812
          %v1860 = vsub.f32 %v1636, %v1814
          %v1861 = vsub.f32 %v1637, %v1816
          %v1862 = vsub.f32 %v1638, %v1818
          %v1863 = vsub.f32 %v1639, %v1820
          %v1864 = vsub.f32 %v1640, %v1822
          %v1865 = vsub.f32 %v1641, %v1824
          %v1866 = vsub.f32 %v1642, %v1826
          %v1867 = vsub.f32 %v1643, %v1828
          %v1868 = vsub.f32 %v1644, %v1830
          %v1869 = vsub.f32 %v1645, %v1832
          %v1870 = vsub.f32 %v1646, %v1834
          %v1871 = vsub.f32 %v1647, %v1836
          %v1872 = vsub.f32 %v1648, %v1838
          %v1873 = vsub.f32 %v1649, %v1840
          %v1874 = vsub.f32 %v1650, %v1842
          %1875 = vst [vmem:[%s258] sm:$0xff] %v1843
          %1876 = vst [vmem:[%s258 + $0x8] sm:$0xff] %v1844
          %1877 = vst [vmem:[%s258 + $0x10] sm:$0xff] %v1845
          %1878 = vst [vmem:[%s258 + $0x18] sm:$0xff] %v1846
          %1879 = vst [vmem:[%s258 + $0x20] sm:$0xff] %v1847
          %1880 = vst [vmem:[%s258 + $0x28] sm:$0xff] %v1848
          %1881 = vst [vmem:[%s258 + $0x30] sm:$0xff] %v1849
          %1882 = vst [vmem:[%s258 + $0x38] sm:$0xff] %v1850
          %1883 = vst [vmem:[%s258 + $0x40] sm:$0xff] %v1851
          %1884 = vst [vmem:[%s258 + $0x48] sm:$0xff] %v1852
          %1885 = vst [vmem:[%s258 + $0x50] sm:$0xff] %v1853
          %1886 = vst [vmem:[%s258 + $0x58] sm:$0xff] %v1854
          %1887 = vst [vmem:[%s258 + $0x60] sm:$0xff] %v1855
          %1888 = vst [vmem:[%s258 + $0x68] sm:$0xff] %v1856
          %1889 = vst [vmem:[%s258 + $0x70] sm:$0xff] %v1857
          %1890 = vst [vmem:[%s258 + $0x78] sm:$0xff] %v1858
          %1891 = vst [vmem:[%s258 + $0x80] sm:$0xff] %v1859
          %1892 = vst [vmem:[%s258 + $0x88] sm:$0xff] %v1860
          %1893 = vst [vmem:[%s258 + $0x90] sm:$0xff] %v1861
          %1894 = vst [vmem:[%s258 + $0x98] sm:$0xff] %v1862
          %1895 = vst [vmem:[%s258 + $0xa0] sm:$0xff] %v1863
          %1896 = vst [vmem:[%s258 + $0xa8] sm:$0xff] %v1864
          %1897 = vst [vmem:[%s258 + $0xb0] sm:$0xff] %v1865
          %1898 = vst [vmem:[%s258 + $0xb8] sm:$0xff] %v1866
          %1899 = vst [vmem:[%s258 + $0xc0] sm:$0xff] %v1867
          %1900 = vst [vmem:[%s258 + $0xc8] sm:$0xff] %v1868
          %1901 = vst [vmem:[%s258 + $0xd0] sm:$0xff] %v1869
          %1902 = vst [vmem:[%s258 + $0xd8] sm:$0xff] %v1870
          %1903 = vst [vmem:[%s258 + $0xe0] sm:$0xff] %v1871
          %1904 = vst [vmem:[%s258 + $0xe8] sm:$0xff] %v1872
          %1905 = vst [vmem:[%s258 + $0xf0] sm:$0xff] %v1873
          %1906 = vst [vmem:[%s258 + $0xf8] sm:$0xff] %v1874
        $region60: #{tpu_custom_call.1} parent=39 // pred_fallthru
          _
        %s1907 = sand.u32 %s140, 1
        %s1908 = scalar_lea.sflag [#allocation5], %s1907
        %s1909 = sand.u32 %s140, 1
        %s1910 = smul.addr %s1909, 256
        %s1911 = scalar_lea.vmem [#allocation9], %s1910
        // Predicated region
        $region61: #{tpu_custom_call.1} parent=39 // pred_check
          %p1912 = pneg %p150
        $region62: #{tpu_custom_call.1} parent=39 // pred_check_branch
          %1914 = sbr.rel (%p1912) target = $region64
        $region63: #{tpu_custom_call.1} parent=39 // pred_region
          %s1915 = ssub.s32 %s21, 1
          %p1916 = scmp.gt.s32.totalorder %s1915, 0
          %s1917 = scalar_select %p1916, %s1915, 0
          %s1918 = smul.u32 32, %s1917
          %1920 = vsyncadd %s1908, 0
          %s1921 = smul.addr %s1918, 8
          %s1922 = scalar_lea.hbm %s5, %s1921
          %s1923 = sshll.u32 %s1911, 4
          %s1924 = int_to_ptr.vmem [resolvable:$true] %s1923
          %s1925 = sshll.u32 %s1922, 4
          %s1926 = int_to_ptr.hbm [resolvable:$true] %s1925
          %1931 = dma.vmem_to_hbm [thread:$0]  %s1924, 4096, %s1926, %s1908, 128, 128, 8
        $region64: #{tpu_custom_call.1} parent=39 // pred_fallthru
          _
      $region40: #{tpu_custom_call.1} parent=5 // pred_fallthru
        _
      %p1932 = scmp.le.s32.totalorder 2, %s16
      // Predicated region
      $region65: #{tpu_custom_call.1} parent=5 // pred_check
        %p1933 = pneg %p1932
      $region66: #{tpu_custom_call.1} parent=5 // pred_check_branch
        %1935 = sbr.rel (%p1933) target = $region68
      $region67: #{tpu_custom_call.1} parent=5 // pred_region
        %s1936 = ssub.s32 %s16, 2
        // Predicated region
        $region69: #{tpu_custom_call.1} parent=67 // pred_check
          %p1937 = pneg %p156
        $region70: #{tpu_custom_call.1} parent=67 // pred_check_branch
          %1939 = sbr.rel (%p1937) target = $region72
        $region71: #{tpu_custom_call.1} parent=67 // pred_region
          %s1940 = sand.u32 %s141, 1
          %s1941 = scalar_lea.sflag [#allocation5], %s1940
          %s1942 = sand.u32 %s141, 1
          %s1943 = smul.addr %s1942, 256
          %s1944 = scalar_lea.vmem [#allocation9], %s1943
          %1946 = dma.done %s1941, 4096
        $region72: #{tpu_custom_call.1} parent=67 // pred_fallthru
          _
      $region68: #{tpu_custom_call.1} parent=5 // pred_fallthru
        _
    $region6: #{tpu_custom_call.1} parent=1 // loop_footer
      %s20 = sadd.s32 1, %s16
    $region7: #{tpu_custom_call.1} parent=1 // loop_footer_branch
      %15 = sbr.rel target = $region3
    $region8: #{tpu_custom_call.1} parent=1 // loop_exit
      _
    %1947 = vsyncpa [#allocation4], 1
    %s1948 = scalar_lea.sflag [#allocation4], 1
    %1949 = vsyncpa %s1948, 1
    %1950 = vsyncpa [#allocation7], 1
    %1951 = vsyncpa [#allocation5], 1
    %s1952 = scalar_lea.sflag [#allocation5], 1
    %1953 = vsyncpa %s1952, 1

</llo_original>
